<compile_context>
chip_gen: v6e
topology: v6e:2x2x1
jax: 0.10.0
libtpu: 0.0.40
codegen_flags: <defaults>
</compile_context>

<pallas_src>
import functools

import jax
import jax.numpy as jnp
from jax.experimental import pallas as pl
from jax.experimental.pallas import tpu as pltpu


# ----------------------------------------------------------------------------
# Pallas kernels
# ----------------------------------------------------------------------------
def _conv_mm_kernel(a_ref, w_ref, b_ref, o_ref, *, n_valid):
    """One (tm, Kp) x (Kp, tn) tile: matmul + bias; store first n_valid cols."""
    res = jnp.dot(a_ref[...], w_ref[...],
                  preferred_element_type=jnp.float32) + b_ref[...]
    o_ref[...] = res[:, :n_valid].astype(o_ref.dtype)


def _conv_mm_gated_kernel(a_ref, wa_ref, ba_ref, wg_ref, bg_ref, o_ref, *,
                          act, n_valid):
    """Fused conv matmul + gated activation:
       act(a @ Wa + ba) * sigmoid(a @ Wg + bg)."""
    a = a_ref[...]
    ha = jnp.dot(a, wa_ref[...], preferred_element_type=jnp.float32) + ba_ref[...]
    hg = jnp.dot(a, wg_ref[...], preferred_element_type=jnp.float32) + bg_ref[...]
    if act == 'elu':
        h = jnp.where(ha > 0, ha, jnp.exp(ha) - 1.0)
    else:  # relu
        h = jnp.maximum(ha, 0.0)
    sig = pl.reciprocal(1.0 + jnp.exp(-hg), approx=True)  # EUP slot, near-free
    res = h * sig
    o_ref[...] = res[:, :n_valid].astype(o_ref.dtype)


def _bmm_kernel(a_ref, b_ref, o_ref):
    o_ref[...] = jnp.dot(a_ref[...], b_ref[...],
                         preferred_element_type=jnp.float32)


# ----------------------------------------------------------------------------
# Pallas wrappers
# ----------------------------------------------------------------------------
def _round_up(x, m):
    return ((x + m - 1) // m) * m


def _pick_tm(mp):
    # Prefer >=2 M blocks so v7x's two TensorCores both get work.
    for t in (512, 256, 128):
        if mp % t == 0 and mp // t >= 2:
            return t
    for t in (512, 256, 128):
        if mp % t == 0:
            return t
    return 128


def _conv_matmul(patches, wa, ba, wg, bg, act, n_out):
    """patches: (M, Kp) bf16; wa/wg: (Kp, Np) bf16; ba/bg: (1, Np) f32.
    Single K block (no reduction grid axis), 2-D parallel grid."""
    M, Kp = patches.shape
    Np = wa.shape[1]
    Mp = _round_up(M, 128)
    if Mp != M:
        patches = jnp.pad(patches, ((0, Mp - M), (0, 0)))
    tm = _pick_tm(Mp)
    if n_out == Np:
        tn = 256 if Np % 256 == 0 else 128
        bn = tn
    else:
        tn = Np            # single N tile; kernel slices to the true width
        bn = n_out

    gated = wg is not None
    if gated:
        kern = functools.partial(_conv_mm_gated_kernel, act=act, n_valid=bn)
        in_specs = [
            pl.BlockSpec((tm, Kp), lambda i, j: (i, 0)),
            pl.BlockSpec((Kp, tn), lambda i, j: (0, j)),
            pl.BlockSpec((1, tn), lambda i, j: (0, j)),
            pl.BlockSpec((Kp, tn), lambda i, j: (0, j)),
            pl.BlockSpec((1, tn), lambda i, j: (0, j)),
        ]
        operands = (patches, wa, ba, wg, bg)
    else:
        kern = functools.partial(_conv_mm_kernel, n_valid=bn)
        in_specs = [
            pl.BlockSpec((tm, Kp), lambda i, j: (i, 0)),
            pl.BlockSpec((Kp, tn), lambda i, j: (0, j)),
            pl.BlockSpec((1, tn), lambda i, j: (0, j)),
        ]
        operands = (patches, wa, ba)

    out = pl.pallas_call(
        kern,
        out_shape=jax.ShapeDtypeStruct((Mp, n_out), jnp.float32),
        grid_spec=pltpu.PrefetchScalarGridSpec(
            num_scalar_prefetch=0,
            grid=(Mp // tm, Np // tn),
            in_specs=in_specs,
            out_specs=pl.BlockSpec((tm, bn), lambda i, j: (i, j))),
        compiler_params=pltpu.CompilerParams(
            dimension_semantics=("parallel", "parallel")),
    )(*operands)
    return out if Mp == M else out[:M]


@functools.partial(jax.jit,
                   static_argnames=('ksize', 'stride', 'padding', 'dilation',
                                    'act', 'n_out'))
def gconv2d_pallas(x, wa, ba, wg, bg, *, ksize, stride, padding, dilation,
                   act, n_out):
    """x: (B,Cin,H,W) f32 -> (B,n_out,Ho,Wo) f32.  im2col in JAX glue (bf16),
    matmul + bias + gated activation fused in one Pallas call."""
    B, Cin, H, W = x.shape
    Ho = (H + 2 * padding - dilation * (ksize - 1) - 1) // stride + 1
    Wo = (W + 2 * padding - dilation * (ksize - 1) - 1) // stride + 1
    xb = x.astype(jnp.bfloat16)
    xp = jnp.pad(xb, ((0, 0), (0, 0), (padding, padding), (padding, padding)))
    cols = []
    for kh in range(ksize):
        for kw in range(ksize):
            sl = xp[:, :,
                    kh * dilation:kh * dilation + stride * (Ho - 1) + 1:stride,
                    kw * dilation:kw * dilation + stride * (Wo - 1) + 1:stride]
            cols.append(sl)
    # TODO(synk): fuse im2col into the matmul kernel (shifted-window reads via
    # index_map / manual DMA) to avoid materializing k*k-duplicated patches.
    patches = jnp.stack(cols, axis=2)                       # (B,Cin,k*k,Ho,Wo)
    patches = patches.transpose(0, 3, 4, 1, 2).reshape(
        B * Ho * Wo, Cin * ksize * ksize)
    K = Cin * ksize * ksize
    Kp = wa.shape[0]
    if Kp != K:
        patches = jnp.pad(patches, ((0, 0), (0, Kp - K)))
    y = _conv_matmul(patches, wa, ba, wg, bg, act, n_out)   # (B*Ho*Wo, n_out)
    return y.reshape(B, Ho, Wo, n_out).transpose(0, 3, 1, 2)


def bmm_pallas(a, b):
    """Batched matmul (Bn,M,K) @ (Bn,K,N) -> (Bn,M,N) f32; one grid step per
    batch element (attention operands at coarse resolution fit VMEM)."""
    Bn, M, K = a.shape
    _, _, N = b.shape
    return pl.pallas_call(
        _bmm_kernel,
        out_shape=jax.ShapeDtypeStruct((Bn, M, N), jnp.float32),
        grid_spec=pltpu.PrefetchScalarGridSpec(
            num_scalar_prefetch=0,
            grid=(Bn,),
            in_specs=[pl.BlockSpec((None, M, K), lambda i: (i, 0, 0)),
                      pl.BlockSpec((None, K, N), lambda i: (i, 0, 0))],
            out_specs=pl.BlockSpec((None, M, N), lambda i: (i, 0, 0))),
        compiler_params=pltpu.CompilerParams(
            dimension_semantics=("parallel",)),
    )(a, b)


# ----------------------------------------------------------------------------
# JAX glue (unfold / fuse / col2im)
# ----------------------------------------------------------------------------
def unfold(x, ksize, stride, padding):
    """torch.nn.Unfold semantics: (B,C,H,W) -> (B, C*k*k, L)."""
    B, C, H, W = x.shape
    Ho = (H + 2 * padding - ksize) // stride + 1
    Wo = (W + 2 * padding - ksize) // stride + 1
    xp = jnp.pad(x, ((0, 0), (0, 0), (padding, padding), (padding, padding)))
    cols = []
    for kh in range(ksize):
        for kw in range(ksize):
            sl = xp[:, :, kh:kh + stride * (Ho - 1) + 1:stride,
                    kw:kw + stride * (Wo - 1) + 1:stride]
            cols.append(sl)
    patches = jnp.stack(cols, axis=2)                       # (B,C,k*k,Ho,Wo)
    return patches.reshape(B, C * ksize * ksize, Ho * Wo), Ho, Wo


def fuse_diag(z):
    """3x3 identity-kernel conv (fuse_weight = eye(3)), padding 1, over the
    last two axes."""
    pad = [(0, 0)] * (z.ndim - 2) + [(1, 1), (1, 1)]
    zp = jnp.pad(z, pad)
    return zp[..., :-2, :-2] + zp[..., 1:-1, 1:-1] + zp[..., 2:, 2:]


@functools.partial(jax.jit, static_argnames=('ksize', 'stride', 'rate',
                                             'softmax_scale', 'n_down'))
def contextual_attention(f, b, mask, *, ksize=3, stride=1, rate=2,
                         softmax_scale=10.0, n_down=2):
    Bn, C, Hr, Wr = f.shape
    kernel = 2 * rate

    # Raw value patches (conv-transpose weights), one set per batch element.
    raw_p, _, _ = unfold(b, kernel, rate * stride, (kernel - 1) // 2)
    L = raw_p.shape[-1]
    raw_w = raw_p.reshape(Bn, C, kernel, kernel, L).transpose(0, 4, 1, 2, 3)

    # Nearest downsample by `rate`.
    f_ds = f[:, :, ::rate, ::rate]
    b_ds = b[:, :, ::rate, ::rate]
    Hf, Wf = f_ds.shape[2], f_ds.shape[3]
    Hb, Wb = b_ds.shape[2], b_ds.shape[3]

    # Matching patches.
    w_p, _, _ = unfold(b_ds, ksize, stride, (ksize - 1) // 2)
    w = w_p.reshape(Bn, C, ksize, ksize, L).transpose(0, 4, 1, 2, 3)

    # Valid-patch mask (first batch element, as in the reference).
    ds = (2 ** n_down) * rate
    mask_ds = mask[:, :, ::ds, ::ds]
    m_p, _, _ = unfold(mask_ds, ksize, stride, (ksize - 1) // 2)
    m = m_p.reshape(Bn, 1, ksize, ksize, L).transpose(0, 4, 1, 2, 3)[0]
    mm = (jnp.mean(m, axis=(1, 2, 3), keepdims=True) == 0.0).astype(jnp.float32)
    mm = mm.transpose(1, 0, 2, 3)                            # (1, L, 1, 1)

    # --- batched matching conv (Pallas bmm) ----------------------------------
    max_w = jnp.sqrt(jnp.sum(w ** 2, axis=(2, 3, 4), keepdims=True))
    w_normed = w / jnp.maximum(max_w, 1e-4)
    f_patches, _, _ = unfold(f_ds, ksize, 1, (ksize - 1) // 2)  # (Bn,C*k*k,Hf*Wf)
    a_mat = f_patches.transpose(0, 2, 1).astype(jnp.bfloat16)   # (Bn,Hf*Wf,C*k*k)
    w_mat = w_normed.reshape(Bn, L, C * ksize * ksize).transpose(0, 2, 1)
    scores = bmm_pallas(a_mat, w_mat.astype(jnp.bfloat16))      # (Bn,Hf*Wf,L)
    yi = scores.transpose(0, 2, 1).reshape(Bn, L, Hf, Wf)

    # Fuse: identity-diagonal 3x3 conv over (bg-index, fg-index), both orders.
    z = yi.reshape(Bn, L, Hf * Wf)
    z = fuse_diag(z)
    z = z.reshape(Bn, Hb, Wb, Hf, Wf).transpose(0, 2, 1, 4, 3).reshape(
        Bn, Wb * Hb, Wf * Hf)
    z = fuse_diag(z)
    z = z.reshape(Bn, Wb, Hb, Wf, Hf).transpose(0, 2, 1, 4, 3)
    yi = z.reshape(Bn, L, Hf, Wf)

    yi = yi * mm
    yi = jax.nn.softmax(yi * softmax_scale, axis=1)  # TODO(synk): softmax kept in JAX glue
    yi = yi * mm

    # --- batched conv-transpose with the raw patches (Pallas bmm + col2im) ---
    a2 = yi.reshape(Bn, L, Hf * Wf).transpose(0, 2, 1).astype(jnp.bfloat16)
    w2 = raw_w.reshape(Bn, L, C * kernel * kernel).astype(jnp.bfloat16)
    M2 = bmm_pallas(a2, w2)                                   # (Bn,Hf*Wf,C*k*k)
    M2 = M2.reshape(Bn, Hf, Wf, C, kernel, kernel)

    pad_t = 1
    Ho = (Hf - 1) * rate - 2 * pad_t + kernel
    Wo = (Wf - 1) * rate - 2 * pad_t + kernel
    out = jnp.zeros((Bn, C, Ho + 2 * pad_t, Wo + 2 * pad_t), jnp.float32)
    for kh in range(kernel):
        for kw in range(kernel):
            contrib = M2[:, :, :, :, kh, kw].transpose(0, 3, 1, 2)  # (Bn,C,Hf,Wf)
            out = out.at[:, :, kh:kh + rate * (Hf - 1) + 1:rate,
                         kw:kw + rate * (Wf - 1) + 1:rate].add(contrib)
    return out[:, :, pad_t:pad_t + Ho, pad_t:pad_t + Wo] / 4.0


# ----------------------------------------------------------------------------
# Modules
# ----------------------------------------------------------------------------
def make_keygen(seed=0):
    key = jax.random.PRNGKey(seed)

    def nk():
        nonlocal key
        key, sub = jax.random.split(key)
        return sub
    return nk


class GConvM:
    """Gated conv: conv -> split -> act(a) * sigmoid(g), fused in one Pallas call.
    Weights are pre-transposed / pre-padded / cast to bf16 once at init."""

    def __init__(self, nk, cin, cout, ksize, stride=1, padding='auto',
                 rate=1, activation='elu'):
        self.cout = cout
        self.ksize = ksize
        self.stride = stride
        self.rate = rate
        self.activation = activation
        self.pad = rate * (ksize - 1) // 2 if padding == 'auto' else padding
        self.gated = not (cout == 3 or activation is None)
        cfin = 2 * cout if self.gated else cout
        fan_in = cin * ksize * ksize
        w = (jax.random.normal(nk(), (cfin, cin, ksize, ksize), jnp.float32)
             * (1.0 / fan_in ** 0.5))
        bias = jnp.zeros((cfin,), jnp.float32)

        K = cin * ksize * ksize
        Kp = _round_up(K, 128)
        wm = w.reshape(cfin, K).T                            # (K, cfin)

        def prep(w_cols, b_cols, n):
            Np = _round_up(n, 128)
            wp = jnp.pad(w_cols, ((0, Kp - K), (0, Np - n))).astype(jnp.bfloat16)
            bp = jnp.pad(b_cols, ((0, Np - n),)).reshape(1, Np).astype(jnp.float32)
            return wp, bp

        if self.gated:
            self.wa, self.ba = prep(wm[:, :cout], bias[:cout], cout)
            self.wg, self.bg = prep(wm[:, cout:], bias[cout:], cout)
            self.n_out = cout
        else:
            self.wa, self.ba = prep(wm, bias, cfin)
            self.wg, self.bg = None, None
            self.n_out = cfin

    def __call__(self, x):
        return gconv2d_pallas(
            x, self.wa, self.ba, self.wg, self.bg,
            ksize=self.ksize, stride=self.stride, padding=self.pad,
            dilation=self.rate,
            act=self.activation if self.gated else None,
            n_out=self.n_out)


class GDownBlockM:
    def __init__(self, nk, cin, cout, chidden=None):
        chidden = cout if chidden is None else chidden
        self.c1 = GConvM(nk, cin, chidden, 3, 2)
        self.c2 = GConvM(nk, chidden, cout, 3, 1)

    def __call__(self, x):
        return self.c2(self.c1(x))


class GDeConvM:
    def __init__(self, nk, cin, cout, padding=1):
        self.conv = GConvM(nk, cin, cout, 3, 1, padding=padding)

    def __call__(self, x):
        # TODO(synk): fuse the nearest x2 upsample into the conv im2col/index_map
        # instead of materializing the 4x-larger activation.
        x = jnp.repeat(jnp.repeat(x, 2, axis=2), 2, axis=3)
        return self.conv(x)


class GUpBlockM:
    def __init__(self, nk, cin, cout, chidden=None):
        chidden = cout if chidden is None else chidden
        self.c1 = GDeConvM(nk, cin, chidden)
        self.c2 = GConvM(nk, chidden, cout, 3, 1)

    def __call__(self, x):
        return self.c2(self.c1(x))


class CoarseGeneratorM:
    def __init__(self, nk, cnum_in, cnum):
        c = cnum
        self.conv1 = GConvM(nk, cnum_in, c // 2, 5, 1, padding=2)
        self.down1 = GDownBlockM(nk, c // 2, c)
        self.down2 = GDownBlockM(nk, c, 2 * c)
        self.bn1 = GConvM(nk, 2 * c, 2 * c, 3, 1)
        self.bn2 = GConvM(nk, 2 * c, 2 * c, 3, rate=2, padding=2)
        self.bn3 = GConvM(nk, 2 * c, 2 * c, 3, rate=4, padding=4)
        self.bn4 = GConvM(nk, 2 * c, 2 * c, 3, rate=8, padding=8)
        self.bn5 = GConvM(nk, 2 * c, 2 * c, 3, rate=16, padding=16)
        self.bn6 = GConvM(nk, 2 * c, 2 * c, 3, 1)
        self.bn7 = GConvM(nk, 2 * c, 2 * c, 3, 1)
        self.up1 = GUpBlockM(nk, 2 * c, c)
        self.up2 = GUpBlockM(nk, c, c // 4, chidden=c // 2)
        self.to_rgb = GConvM(nk, c // 4, 3, 3, 1, activation=None)

    def __call__(self, x):
        x = self.conv1(x)
        x = self.down1(x)
        x = self.down2(x)
        for m in (self.bn1, self.bn2, self.bn3, self.bn4, self.bn5,
                  self.bn6, self.bn7):
            x = m(x)
        x = self.up1(x)
        x = self.up2(x)
        x = self.to_rgb(x)
        return jnp.tanh(x)


class FineGeneratorM:
    def __init__(self, nk, cnum):
        c = cnum
        self.conv_conv1 = GConvM(nk, 3, c // 2, 5, 1, padding=2)
        self.conv_down1 = GDownBlockM(nk, c // 2, c, chidden=c // 2)
        self.conv_down2 = GDownBlockM(nk, c, 2 * c, chidden=c)
        self.conv_bn1 = GConvM(nk, 2 * c, 2 * c, 3, 1)
        self.conv_bn2 = GConvM(nk, 2 * c, 2 * c, 3, rate=2, padding=2)
        self.conv_bn3 = GConvM(nk, 2 * c, 2 * c, 3, rate=4, padding=4)
        self.conv_bn4 = GConvM(nk, 2 * c, 2 * c, 3, rate=8, padding=8)
        self.conv_bn5 = GConvM(nk, 2 * c, 2 * c, 3, rate=16, padding=16)
        self.ca_conv1 = GConvM(nk, 3, c // 2, 5, 1, padding=2)
        self.ca_down1 = GDownBlockM(nk, c // 2, c, chidden=c // 2)
        self.ca_down2 = GDownBlockM(nk, c, 2 * c)
        self.ca_bn1 = GConvM(nk, 2 * c, 2 * c, 3, 1, activation='relu')
        self.ca_bn4 = GConvM(nk, 2 * c, 2 * c, 3, 1)
        self.ca_bn5 = GConvM(nk, 2 * c, 2 * c, 3, 1)
        self.bn6 = GConvM(nk, 4 * c, 2 * c, 3, 1)
        self.bn7 = GConvM(nk, 2 * c, 2 * c, 3, 1)
        self.up1 = GUpBlockM(nk, 2 * c, c)
        self.up2 = GUpBlockM(nk, c, c // 4, chidden=c // 2)
        self.to_rgb = GConvM(nk, c // 4, 3, 3, 1, activation=None)

    def __call__(self, x, mask):
        xnow = x
        x = self.conv_conv1(xnow)
        x = self.conv_down1(x)
        x = self.conv_down2(x)
        for m in (self.conv_bn1, self.conv_bn2, self.conv_bn3,
                  self.conv_bn4, self.conv_bn5):
            x = m(x)
        x_hallu = x

        x = self.ca_conv1(xnow)
        x = self.ca_down1(x)
        x = self.ca_down2(x)
        x = self.ca_bn1(x)
        x = contextual_attention(x, x, mask, ksize=3, stride=1, rate=2,
                                 softmax_scale=10.0, n_down=2)
        x = self.ca_bn4(x)
        x = self.ca_bn5(x)
        pm = x

        x = jnp.concatenate([x_hallu, pm], axis=1)
        x = self.bn6(x)
        x = self.bn7(x)
        x = self.up1(x)
        x = self.up2(x)
        x = self.to_rgb(x)
        return jnp.tanh(x), None


class GeneratorM:
    def __init__(self, nk, cnum_in=5, cnum=48):
        self.stage1 = CoarseGeneratorM(nk, cnum_in, cnum)
        self.stage2 = FineGeneratorM(nk, cnum)

    def __call__(self, x, mask):
        xin = x
        x_stage1 = self.stage1(x)
        x = x_stage1 * mask + xin[:, 0:3, :, :] * (1.0 - mask)
        x_stage2, _ = self.stage2(x, mask)
        return x_stage1, x_stage2


# ----------------------------------------------------------------------------
if __name__ == "__main__":
    # Small shapes: batch=2, cnum_in=5 channels, 32x32 spatial (divisible by 8),
    # cnum=16 (so bottleneck is 2*cnum=32 channels at 8x8).
    nk = make_keygen(seed=0)
    gen = GeneratorM(nk, cnum_in=5, cnum=16)

    key = jax.random.PRNGKey(0)
    kx, km = jax.random.split(key)
    B, H, W = 2, 32, 32
    x = jax.random.normal(kx, (B, 5, H, W), jnp.float32)
    mask = (jax.random.uniform(km, (B, 1, H, W)) > 0.5).astype(jnp.float32)

    x_stage1, x_stage2 = gen(x, mask)
    jax.block_until_ready((x_stage1, x_stage2))

    assert x_stage1.shape == (B, 3, H, W), x_stage1.shape
    assert x_stage2.shape == (B, 3, H, W), x_stage2.shape
    assert jnp.all(jnp.isfinite(x_stage1)) and jnp.all(jnp.isfinite(x_stage2))
    print("KERNEL_OK")
</pallas_src>

<mosaic_0001>
module attributes {stable_mosaic.version = 11 : i64} {
  func.func @_conv_mm_gated_kernel(%arg0: i32, %arg1: i32, %arg2: memref<512x128xbf16, #tpu.memory_space<vmem>>, %arg3: memref<128x128xbf16, #tpu.memory_space<vmem>>, %arg4: memref<1x128xf32, #tpu.memory_space<vmem>>, %arg5: memref<128x128xbf16, #tpu.memory_space<vmem>>, %arg6: memref<1x128xf32, #tpu.memory_space<vmem>>, %arg7: memref<512x8xf32, #tpu.memory_space<vmem>>) attributes {dimension_semantics = [#tpu.dimension_semantics<parallel>, #tpu.dimension_semantics<parallel>], iteration_bounds = array<i64: 4, 1>, scalar_prefetch = 0 : i64, scratch_operands = 0 : i64, tpu.core_type = #tpu.core_type<tc>, window_params = [{transform_indices = @transform_0, window_bounds = array<i64: 512, 128>}, {transform_indices = @transform_1, window_bounds = array<i64: 128, 128>}, {transform_indices = @transform_2, window_bounds = array<i64: 1, 128>}, {transform_indices = @transform_3, window_bounds = array<i64: 128, 128>}, {transform_indices = @transform_4, window_bounds = array<i64: 1, 128>}, {transform_indices = @transform_5, window_bounds = array<i64: 512, 8>}]} {
    %c0 = arith.constant 0 : index
    %c0_0 = arith.constant 0 : index
    %0 = vector.load %arg2[%c0, %c0_0] : memref<512x128xbf16, #tpu.memory_space<vmem>>, vector<512x128xbf16>
    %c0_1 = arith.constant 0 : index
    %c0_2 = arith.constant 0 : index
    %1 = vector.load %arg3[%c0_1, %c0_2] : memref<128x128xbf16, #tpu.memory_space<vmem>>, vector<128x128xbf16>
    %cst = arith.constant dense<0.000000e+00> : vector<512x128xf32>
    %2 = tpu.matmul %0, %1, %cst {dimension_numbers = #tpu.dot_dimension_numbers<[1], [0], [0], [1], [0, 0, 1, 1], [], []>} : vector<512x128xbf16>, vector<128x128xbf16>, vector<512x128xf32> -> vector<512x128xf32>
    %c0_3 = arith.constant 0 : index
    %c0_4 = arith.constant 0 : index
    %3 = vector.load %arg4[%c0_3, %c0_4] : memref<1x128xf32, #tpu.memory_space<vmem>>, vector<1x128xf32>
    %4 = vector.broadcast %3 : vector<1x128xf32> to vector<512x128xf32>
    %5 = arith.addf %2, %4 : vector<512x128xf32>
    %c0_5 = arith.constant 0 : index
    %c0_6 = arith.constant 0 : index
    %6 = vector.load %arg5[%c0_5, %c0_6] : memref<128x128xbf16, #tpu.memory_space<vmem>>, vector<128x128xbf16>
    %cst_7 = arith.constant dense<0.000000e+00> : vector<512x128xf32>
    %7 = tpu.matmul %0, %6, %cst_7 {dimension_numbers = #tpu.dot_dimension_numbers<[1], [0], [0], [1], [0, 0, 1, 1], [], []>} : vector<512x128xbf16>, vector<128x128xbf16>, vector<512x128xf32> -> vector<512x128xf32>
    %c0_8 = arith.constant 0 : index
    %c0_9 = arith.constant 0 : index
    %8 = vector.load %arg6[%c0_8, %c0_9] : memref<1x128xf32, #tpu.memory_space<vmem>>, vector<1x128xf32>
    %9 = vector.broadcast %8 : vector<1x128xf32> to vector<512x128xf32>
    %10 = arith.addf %7, %9 : vector<512x128xf32>
    %cst_10 = arith.constant 0.000000e+00 : f32
    %11 = vector.broadcast %cst_10 : f32 to vector<512x128xf32>
    %12 = arith.cmpf ogt, %5, %11 : vector<512x128xf32>
    %13 = math.exp %5 : vector<512x128xf32>
    %cst_11 = arith.constant 1.000000e+00 : f32
    %14 = vector.broadcast %cst_11 : f32 to vector<512x128xf32>
    %15 = arith.subf %13, %14 : vector<512x128xf32>
    %16 = arith.select %12, %5, %15 : vector<512x128xi1>, vector<512x128xf32>
    %cst_12 = arith.constant 0.000000e+00 : f32
    %17 = vector.broadcast %cst_12 : f32 to vector<512x128xf32>
    %18 = arith.subf %17, %10 : vector<512x128xf32>
    %19 = math.exp %18 : vector<512x128xf32>
    %cst_13 = arith.constant 1.000000e+00 : f32
    %20 = vector.broadcast %cst_13 : f32 to vector<512x128xf32>
    %21 = arith.addf %20, %19 : vector<512x128xf32>
    %22 = tpu.reciprocal %21 {approx = true} : vector<512x128xf32> -> vector<512x128xf32>
    %23 = arith.mulf %16, %22 : vector<512x128xf32>
    %24 = vector.extract_strided_slice %23 {offsets = [0, 0], sizes = [512, 8], strides = [1, 1]} : vector<512x128xf32> to vector<512x8xf32>
    %c0_14 = arith.constant 0 : index
    %c0_15 = arith.constant 0 : index
    %25 = vector.load %arg7[%c0_14, %c0_15] : memref<512x8xf32, #tpu.memory_space<vmem>>, vector<512x8xf32>
    tpu.vector_store %arg7[%c0_14, %c0_15], %24 {strides = array<i32>} : memref<512x8xf32, #tpu.memory_space<vmem>>, vector<512x8xf32>,
    return
  }
  func.func @transform_0(%arg0: i32, %arg1: i32) -> (i32, i32) {
    %c0_i32 = arith.constant 0 : i32
    %c0_i32_0 = arith.constant 0 : i32
    return %arg0, %c0_i32 : i32, i32
  }
  func.func @transform_1(%arg0: i32, %arg1: i32) -> (i32, i32) {
    %c0_i32 = arith.constant 0 : i32
    %c0_i32_0 = arith.constant 0 : i32
    return %c0_i32, %arg1 : i32, i32
  }
  func.func @transform_2(%arg0: i32, %arg1: i32) -> (i32, i32) {
    %c0_i32 = arith.constant 0 : i32
    %c0_i32_0 = arith.constant 0 : i32
    return %c0_i32, %arg1 : i32, i32
  }
  func.func @transform_3(%arg0: i32, %arg1: i32) -> (i32, i32) {
    %c0_i32 = arith.constant 0 : i32
    %c0_i32_0 = arith.constant 0 : i32
    return %c0_i32, %arg1 : i32, i32
  }
  func.func @transform_4(%arg0: i32, %arg1: i32) -> (i32, i32) {
    %c0_i32 = arith.constant 0 : i32
    %c0_i32_0 = arith.constant 0 : i32
    return %c0_i32, %arg1 : i32, i32
  }
  func.func @transform_5(%arg0: i32, %arg1: i32) -> (i32, i32) {
    %c0_i32 = arith.constant 0 : i32
    return %arg0, %arg1 : i32, i32
  }
}

</mosaic_0001>

<llo_original>
// kernel: gconv2d_pallas.1
$region0: #{gconv2d_pallas.1}
  #allocation0 [shape = 'u32[]', space=smem, size = 0x4, offset = 0x4, fixed_abs, tag = 'smem constant byte address 0x4 - core index']
  #allocation1 [shape = 'u32[144,128]{1,0:T(1,128)}', space=vmem, size = 0x12000, scoped, tag = 'internal scratch']
  %s0 = inlined_call_operand.vmem [shape: bf16[2048,128], index: 0, kind: input, shape index: {}]
  %s1 = inlined_call_operand.vmem [shape: bf16[128,128], index: 1, kind: input, shape index: {}]
  %s2 = inlined_call_operand.vmem [shape: f32[1,128], index: 2, kind: input, shape index: {}]
  %s3 = inlined_call_operand.vmem [shape: bf16[128,128], index: 3, kind: input, shape index: {}]
  %s4 = inlined_call_operand.vmem [shape: f32[1,128], index: 4, kind: input, shape index: {}]
  %s5 = inlined_call_operand.vmem [shape: f32[2048,8], index: 5, kind: output, shape index: {}]
  %s6 = sld [smem:[#allocation0]]
  $region53: #{gconv2d_pallas.1} parent=0
    _
  %s8 = ssub.s32 1, %s6
  %s9 = scalar_select 0, %s8, %s6
  loop: start=0, step=1, limit=6
  $region2: #{gconv2d_pallas.1} parent=0 // loop_pre_header
    _
  $region3: #{gconv2d_pallas.1} parent=0 // loop_header
    %s11 = sphi 0, %s15
    %p12 = scmp.ge.s32.totalorder %s11, 6
    %s18 = sphi 0, %s30
    %s19 = sphi 0, %s26
    %s20 = sphi 0, %s18
    %s21 = sphi 0, %s19
    %s22 = sphi 0, %s20
    %s23 = sphi 0, %s21
    %s33 = sphi 0, %s35
    %s36 = sphi 0, %s33
    %s37 = sphi 0, %s36
    %s53 = sphi 0, %s37
    %s59 = sphi 0, %s61
    %s62 = sphi 0, %s59
    %s63 = sphi 0, %s62
    %s79 = sphi 0, %s63
    %s85 = sphi 0, %s87
    %s88 = sphi 0, %s85
    %s89 = sphi 0, %s88
    %s105 = sphi 0, %s89
    %s111 = sphi 0, %s113
    %s114 = sphi 0, %s111
    %s115 = sphi 0, %s114
    %s131 = sphi 0, %s115
    %s137 = sphi 0, %s139
    %s140 = sphi 0, %s137
    %s141 = sphi 0, %s140
    %s157 = sphi 0, %s141
    %s165 = sphi 0, %s167
    %s168 = sphi 0, %s165
    %s169 = sphi 0, %s168
    %s185 = sphi 0, %s169
  $region4: #{gconv2d_pallas.1} parent=0 // loop_header_branch
    %14 = sbr.rel (%p12) target = $region8
  $region5: #{gconv2d_pallas.1} parent=0 // loop_body
    %s16 = ssub.s32 %s11, 1
    %s17 = ssub.s32 %s11, 2
    %s24 = sadd.s32 1, %s19
    %p25 = scmp.ge.s32.totalorder %s24, 1
    %s26 = scalar_select %p25, 0, %s24
    %s27 = sadd.s32 1, %s18
    %s28 = scalar_select %p25, %s27, %s18
    %p29 = scmp.ge.s32.totalorder %s28, 4
    %s30 = scalar_select %p29, 0, %s28
    %s31 = ssub.s32 %s18, %s30
    %p32 = scmp.eq.s32.totalorder %s31, 0
    %s34 = sadd.s32 %s33, 1
    %s35 = scalar_select %p32, %s33, %s34
    %p38 = pneg %p32
    %p39 = scmp.eq.s32.totalorder %s11, 3
    %p40 = por %p38, %p39
    %p41 = scmp.ne.s32.totalorder %s33, %s36
    %p42 = scmp.eq.s32.totalorder %s11, 0
    %p43 = por %p41, %p42
    %p44 = scmp.ne.s32.totalorder %s33, %s36
    %p45 = scmp.eq.s32.totalorder %s16, 3
    %p46 = por %p44, %p45
    %p47 = scmp.ne.s32.totalorder %s36, %s37
    %p48 = scmp.eq.s32.totalorder %s16, 0
    %p49 = por %p47, %p48
    %p50 = scmp.ne.s32.totalorder %s36, %s37
    %p51 = scmp.eq.s32.totalorder %s17, 3
    %p52 = por %p50, %p51
    %p54 = scmp.ne.s32.totalorder %s37, %s53
    %p55 = scmp.eq.s32.totalorder %s17, 0
    %p56 = por %p54, %p55
    %s57 = ssub.s32 %s19, %s26
    %p58 = scmp.eq.s32.totalorder %s57, 0
    %s60 = sadd.s32 %s59, 1
    %s61 = scalar_select %p58, %s59, %s60
    %p64 = pneg %p58
    %p65 = scmp.eq.s32.totalorder %s11, 3
    %p66 = por %p64, %p65
    %p67 = scmp.ne.s32.totalorder %s59, %s62
    %p68 = scmp.eq.s32.totalorder %s11, 0
    %p69 = por %p67, %p68
    %p70 = scmp.ne.s32.totalorder %s59, %s62
    %p71 = scmp.eq.s32.totalorder %s16, 3
    %p72 = por %p70, %p71
    %p73 = scmp.ne.s32.totalorder %s62, %s63
    %p74 = scmp.eq.s32.totalorder %s16, 0
    %p75 = por %p73, %p74
    %p76 = scmp.ne.s32.totalorder %s62, %s63
    %p77 = scmp.eq.s32.totalorder %s17, 3
    %p78 = por %p76, %p77
    %p80 = scmp.ne.s32.totalorder %s63, %s79
    %p81 = scmp.eq.s32.totalorder %s17, 0
    %p82 = por %p80, %p81
    %s83 = ssub.s32 %s19, %s26
    %p84 = scmp.eq.s32.totalorder %s83, 0
    %s86 = sadd.s32 %s85, 1
    %s87 = scalar_select %p84, %s85, %s86
    %p90 = pneg %p84
    %p91 = scmp.eq.s32.totalorder %s11, 3
    %p92 = por %p90, %p91
    %p93 = scmp.ne.s32.totalorder %s85, %s88
    %p94 = scmp.eq.s32.totalorder %s11, 0
    %p95 = por %p93, %p94
    %p96 = scmp.ne.s32.totalorder %s85, %s88
    %p97 = scmp.eq.s32.totalorder %s16, 3
    %p98 = por %p96, %p97
    %p99 = scmp.ne.s32.totalorder %s88, %s89
    %p100 = scmp.eq.s32.totalorder %s16, 0
    %p101 = por %p99, %p100
    %p102 = scmp.ne.s32.totalorder %s88, %s89
    %p103 = scmp.eq.s32.totalorder %s17, 3
    %p104 = por %p102, %p103
    %p106 = scmp.ne.s32.totalorder %s89, %s105
    %p107 = scmp.eq.s32.totalorder %s17, 0
    %p108 = por %p106, %p107
    %s109 = ssub.s32 %s19, %s26
    %p110 = scmp.eq.s32.totalorder %s109, 0
    %s112 = sadd.s32 %s111, 1
    %s113 = scalar_select %p110, %s111, %s112
    %p116 = pneg %p110
    %p117 = scmp.eq.s32.totalorder %s11, 3
    %p118 = por %p116, %p117
    %p119 = scmp.ne.s32.totalorder %s111, %s114
    %p120 = scmp.eq.s32.totalorder %s11, 0
    %p121 = por %p119, %p120
    %p122 = scmp.ne.s32.totalorder %s111, %s114
    %p123 = scmp.eq.s32.totalorder %s16, 3
    %p124 = por %p122, %p123
    %p125 = scmp.ne.s32.totalorder %s114, %s115
    %p126 = scmp.eq.s32.totalorder %s16, 0
    %p127 = por %p125, %p126
    %p128 = scmp.ne.s32.totalorder %s114, %s115
    %p129 = scmp.eq.s32.totalorder %s17, 3
    %p130 = por %p128, %p129
    %p132 = scmp.ne.s32.totalorder %s115, %s131
    %p133 = scmp.eq.s32.totalorder %s17, 0
    %p134 = por %p132, %p133
    %s135 = ssub.s32 %s19, %s26
    %p136 = scmp.eq.s32.totalorder %s135, 0
    %s138 = sadd.s32 %s137, 1
    %s139 = scalar_select %p136, %s137, %s138
    %p142 = pneg %p136
    %p143 = scmp.eq.s32.totalorder %s11, 3
    %p144 = por %p142, %p143
    %p145 = scmp.ne.s32.totalorder %s137, %s140
    %p146 = scmp.eq.s32.totalorder %s11, 0
    %p147 = por %p145, %p146
    %p148 = scmp.ne.s32.totalorder %s137, %s140
    %p149 = scmp.eq.s32.totalorder %s16, 3
    %p150 = por %p148, %p149
    %p151 = scmp.ne.s32.totalorder %s140, %s141
    %p152 = scmp.eq.s32.totalorder %s16, 0
    %p153 = por %p151, %p152
    %p154 = scmp.ne.s32.totalorder %s140, %s141
    %p155 = scmp.eq.s32.totalorder %s17, 3
    %p156 = por %p154, %p155
    %p158 = scmp.ne.s32.totalorder %s141, %s157
    %p159 = scmp.eq.s32.totalorder %s17, 0
    %p160 = por %p158, %p159
    %s161 = ssub.s32 %s18, %s30
    %s162 = ssub.s32 %s19, %s26
    %s163 = sor.u32 %s161, %s162
    %p164 = scmp.eq.s32.totalorder %s163, 0
    %s166 = sadd.s32 %s165, 1
    %s167 = scalar_select %p164, %s165, %s166
    %p170 = pneg %p164
    %p171 = scmp.eq.s32.totalorder %s11, 3
    %p172 = por %p170, %p171
    %p173 = scmp.ne.s32.totalorder %s165, %s168
    %p174 = scmp.eq.s32.totalorder %s11, 0
    %p175 = por %p173, %p174
    %p176 = scmp.ne.s32.totalorder %s165, %s168
    %p177 = scmp.eq.s32.totalorder %s16, 3
    %p178 = por %p176, %p177
    %p179 = scmp.ne.s32.totalorder %s168, %s169
    %p180 = scmp.eq.s32.totalorder %s16, 0
    %p181 = por %p179, %p180
    %p182 = scmp.ne.s32.totalorder %s168, %s169
    %p183 = scmp.eq.s32.totalorder %s17, 3
    %p184 = por %p182, %p183
    %p186 = scmp.ne.s32.totalorder %s169, %s185
    %p187 = scmp.eq.s32.totalorder %s17, 0
    %p188 = por %p186, %p187
    %p189 = scmp.le.s32.totalorder 1, %s11
    %p190 = scmp.lt.s32.totalorder %s11, 5
    %p191 = pnand %p189, %p190
    %p192 = pneg %p191
    // Predicated region
    $region9: #{gconv2d_pallas.1} parent=5 // pred_check
      _
    $region10: #{gconv2d_pallas.1} parent=5 // pred_check_branch
      %194 = sbr.rel (%p191) target = $region12
    $region11: #{gconv2d_pallas.1} parent=5 // pred_region
      %s195 = ssub.s32 %s11, 1
      // Predicated region
      $region13: #{gconv2d_pallas.1} parent=11 // pred_check
        %p196 = pneg %p75
      $region14: #{gconv2d_pallas.1} parent=11 // pred_check_branch
        %198 = sbr.rel (%p196) target = $region16
      $region15: #{gconv2d_pallas.1} parent=11 // pred_region
        %p199 = scmp.lt.s32.totalorder %s21, 0
        %s200 = scalar_select %p199, %s21, 0
        %s201 = smul.addr %s200, 4
        %s202 = scalar_lea.vmem %s1, %s201
      $region16: #{gconv2d_pallas.1} parent=11 // pred_fallthru
        _
      // Predicated region
      $region17: #{gconv2d_pallas.1} parent=11 // pred_check
        %p203 = pneg %p101
      $region18: #{gconv2d_pallas.1} parent=11 // pred_check_branch
        %205 = sbr.rel (%p203) target = $region20
      $region19: #{gconv2d_pallas.1} parent=11 // pred_region
        %p206 = scmp.lt.s32.totalorder %s21, 0
        %s207 = scalar_select %p206, %s21, 0
        %s208 = scalar_lea.vmem %s2, %s207
      $region20: #{gconv2d_pallas.1} parent=11 // pred_fallthru
        _
      // Predicated region
      $region21: #{gconv2d_pallas.1} parent=11 // pred_check
        %p209 = pneg %p127
      $region22: #{gconv2d_pallas.1} parent=11 // pred_check_branch
        %211 = sbr.rel (%p209) target = $region24
      $region23: #{gconv2d_pallas.1} parent=11 // pred_region
        %p212 = scmp.lt.s32.totalorder %s21, 0
        %s213 = scalar_select %p212, %s21, 0
        %s214 = smul.addr %s213, 4
        %s215 = scalar_lea.vmem %s3, %s214
      $region24: #{gconv2d_pallas.1} parent=11 // pred_fallthru
        _
      // Predicated region
      $region25: #{gconv2d_pallas.1} parent=11 // pred_check
        %p216 = pneg %p153
      $region26: #{gconv2d_pallas.1} parent=11 // pred_check_branch
        %218 = sbr.rel (%p216) target = $region28
      $region27: #{gconv2d_pallas.1} parent=11 // pred_region
        %p219 = scmp.lt.s32.totalorder %s21, 0
        %s220 = scalar_select %p219, %s21, 0
        %s221 = scalar_lea.vmem %s4, %s220
      $region28: #{gconv2d_pallas.1} parent=11 // pred_fallthru
        _
    $region12: #{gconv2d_pallas.1} parent=5 // pred_fallthru
      _
    %p222 = scmp.lt.s32.totalorder %s11, 4
    // Predicated region
    $region29: #{gconv2d_pallas.1} parent=5 // pred_check
      %p223 = pneg %p222
    $region30: #{gconv2d_pallas.1} parent=5 // pred_check_branch
      %225 = sbr.rel (%p223) target = $region32
    $region31: #{gconv2d_pallas.1} parent=5 // pred_region
      // Predicated region
      $region33: #{gconv2d_pallas.1} parent=31 // pred_check
        %p226 = pneg %p43
      $region34: #{gconv2d_pallas.1} parent=31 // pred_check_branch
        %228 = sbr.rel (%p226) target = $region36
      $region35: #{gconv2d_pallas.1} parent=31 // pred_region
        %s229 = smul.u32 64, %s18
        %p230 = scmp.lt.s32.totalorder %s229, 255
        %s231 = scalar_select %p230, %s229, 255
        %s232 = smul.addr %s231, 4
        %s233 = scalar_lea.vmem %s0, %s232
        %s234 = smul.u32 64, %s18
      $region36: #{gconv2d_pallas.1} parent=31 // pred_fallthru
        _
    $region32: #{gconv2d_pallas.1} parent=5 // pred_fallthru
      _
    %p235 = scmp.le.s32.totalorder 1, %s11
    %p236 = scmp.lt.s32.totalorder %s11, 5
    %p237 = pnand %p235, %p236
    %p238 = pneg %p237
    // Predicated region
    $region37: #{gconv2d_pallas.1} parent=5 // pred_check
      _
    $region38: #{gconv2d_pallas.1} parent=5 // pred_check_branch
      %240 = sbr.rel (%p237) target = $region40
    $region39: #{gconv2d_pallas.1} parent=5 // pred_region
      %s241 = ssub.s32 %s11, 1
      %s242 = smul.u32 64, %s20
      %p243 = scmp.lt.s32.totalorder %s242, 255
      %s244 = scalar_select %p243, %s242, 255
      %s245 = smul.addr %s244, 4
      %s246 = scalar_lea.vmem %s0, %s245
      %p247 = pneg %p49
      %p248 = pneg %p46
      %p249 = scmp.lt.s32.totalorder %s21, 0
      %s250 = scalar_select %p249, %s21, 0
      %s251 = smul.addr %s250, 4
      %s252 = scalar_lea.vmem %s1, %s251
      %p253 = pneg %p75
      %p254 = pneg %p72
      %p255 = scmp.lt.s32.totalorder %s21, 0
      %s256 = scalar_select %p255, %s21, 0
      %s257 = scalar_lea.vmem %s2, %s256
      %p258 = pneg %p101
      %p259 = pneg %p98
      %p260 = scmp.lt.s32.totalorder %s21, 0
      %s261 = scalar_select %p260, %s21, 0
      %s262 = smul.addr %s261, 4
      %s263 = scalar_lea.vmem %s3, %s262
      %p264 = pneg %p127
      %p265 = pneg %p124
      %p266 = scmp.lt.s32.totalorder %s21, 0
      %s267 = scalar_select %p266, %s21, 0
      %s268 = scalar_lea.vmem %s4, %s267
      %p269 = pneg %p153
      %p270 = pneg %p150
      %p271 = pneg %p181
      %p272 = pneg %p178
      %s273 = smul.u32 64, %s20
      %p274 = scmp.lt.s32.totalorder %s273, 255
      %s275 = scalar_select %p274, %s273, 255
      %p276 = scmp.lt.s32.totalorder %s21, 0
      %s277 = scalar_select %p276, %s21, 0
      %s278 = sadd.s32 %s277, %s275
      %s279 = smul.addr %s278, 8
      %s280 = scalar_lea.vmem %s5, %s279
      %s281 = smul.u32 64, %s20
      %p282 = scmp.lt.s32.totalorder %s281, 255
      %s283 = scalar_select %p282, %s281, 255
      %s284 = smul.addr %s283, 4
      %s285 = scalar_lea.vmem %s0, %s284
      %s286 = smul.u32 64, %s20
      %p287 = scmp.lt.s32.totalorder %s21, 0
      %s288 = scalar_select %p287, %s21, 0
      %s289 = smul.addr %s288, 4
      %s290 = scalar_lea.vmem %s1, %s289
      %p291 = scmp.lt.s32.totalorder %s21, 0
      %s292 = scalar_select %p291, %s21, 0
      %s293 = scalar_lea.vmem %s2, %s292
      %p294 = scmp.lt.s32.totalorder %s21, 0
      %s295 = scalar_select %p294, %s21, 0
      %s296 = smul.addr %s295, 4
      %s297 = scalar_lea.vmem %s3, %s296
      %p298 = scmp.lt.s32.totalorder %s21, 0
      %s299 = scalar_select %p298, %s21, 0
      %s300 = scalar_lea.vmem %s4, %s299
      %s301 = smul.u32 64, %s20
      %p302 = scmp.lt.s32.totalorder %s301, 255
      %s303 = scalar_select %p302, %s301, 255
      %p304 = scmp.lt.s32.totalorder %s21, 0
      %s305 = scalar_select %p304, %s21, 0
      %s306 = sadd.s32 %s305, %s303
      %s307 = smul.addr %s306, 8
      %s308 = scalar_lea.vmem %s5, %s307
      %s309 = smul.u32 64, %s20
      %v311 = vld [vmem:[%s285] sm:$0xf]
      %v312 = vld [vmem:[%s285 + $0x4] sm:$0xf]
      %v313 = vld [vmem:[%s285 + $0x8] sm:$0xf]
      %v314 = vld [vmem:[%s285 + $0xc] sm:$0xf]
      %v315 = vld [vmem:[%s285 + $0x10] sm:$0xf]
      %v316 = vld [vmem:[%s285 + $0x14] sm:$0xf]
      %v317 = vld [vmem:[%s285 + $0x18] sm:$0xf]
      %v318 = vld [vmem:[%s285 + $0x1c] sm:$0xf]
      %v319 = vld [vmem:[%s285 + $0x20] sm:$0xf]
      %v320 = vld [vmem:[%s285 + $0x24] sm:$0xf]
      %v321 = vld [vmem:[%s285 + $0x28] sm:$0xf]
      %v322 = vld [vmem:[%s285 + $0x2c] sm:$0xf]
      %v323 = vld [vmem:[%s285 + $0x30] sm:$0xf]
      %v324 = vld [vmem:[%s285 + $0x34] sm:$0xf]
      %v325 = vld [vmem:[%s285 + $0x38] sm:$0xf]
      %v326 = vld [vmem:[%s285 + $0x3c] sm:$0xf]
      %v327 = vld [vmem:[%s285 + $0x40] sm:$0xf]
      %v328 = vld [vmem:[%s285 + $0x44] sm:$0xf]
      %v329 = vld [vmem:[%s285 + $0x48] sm:$0xf]
      %v330 = vld [vmem:[%s285 + $0x4c] sm:$0xf]
      %v331 = vld [vmem:[%s285 + $0x50] sm:$0xf]
      %v332 = vld [vmem:[%s285 + $0x54] sm:$0xf]
      %v333 = vld [vmem:[%s285 + $0x58] sm:$0xf]
      %v334 = vld [vmem:[%s285 + $0x5c] sm:$0xf]
      %v335 = vld [vmem:[%s285 + $0x60] sm:$0xf]
      %v336 = vld [vmem:[%s285 + $0x64] sm:$0xf]
      %v337 = vld [vmem:[%s285 + $0x68] sm:$0xf]
      %v338 = vld [vmem:[%s285 + $0x6c] sm:$0xf]
      %v339 = vld [vmem:[%s285 + $0x70] sm:$0xf]
      %v340 = vld [vmem:[%s285 + $0x74] sm:$0xf]
      %v341 = vld [vmem:[%s285 + $0x78] sm:$0xf]
      %v342 = vld [vmem:[%s285 + $0x7c] sm:$0xf]
      %v343 = vld [vmem:[%s285 + $0x80] sm:$0xf]
      %v344 = vld [vmem:[%s285 + $0x84] sm:$0xf]
      %v345 = vld [vmem:[%s285 + $0x88] sm:$0xf]
      %v346 = vld [vmem:[%s285 + $0x8c] sm:$0xf]
      %v347 = vld [vmem:[%s285 + $0x90] sm:$0xf]
      %v348 = vld [vmem:[%s285 + $0x94] sm:$0xf]
      %v349 = vld [vmem:[%s285 + $0x98] sm:$0xf]
      %v350 = vld [vmem:[%s285 + $0x9c] sm:$0xf]
      %v351 = vld [vmem:[%s285 + $0xa0] sm:$0xf]
      %v352 = vld [vmem:[%s285 + $0xa4] sm:$0xf]
      %v353 = vld [vmem:[%s285 + $0xa8] sm:$0xf]
      %v354 = vld [vmem:[%s285 + $0xac] sm:$0xf]
      %v355 = vld [vmem:[%s285 + $0xb0] sm:$0xf]
      %v356 = vld [vmem:[%s285 + $0xb4] sm:$0xf]
      %v357 = vld [vmem:[%s285 + $0xb8] sm:$0xf]
      %v358 = vld [vmem:[%s285 + $0xbc] sm:$0xf]
      %v359 = vld [vmem:[%s285 + $0xc0] sm:$0xf]
      %v360 = vld [vmem:[%s285 + $0xc4] sm:$0xf]
      %v361 = vld [vmem:[%s285 + $0xc8] sm:$0xf]
      %v362 = vld [vmem:[%s285 + $0xcc] sm:$0xf]
      %v363 = vld [vmem:[%s285 + $0xd0] sm:$0xf]
      %v364 = vld [vmem:[%s285 + $0xd4] sm:$0xf]
      %v365 = vld [vmem:[%s285 + $0xd8] sm:$0xf]
      %v366 = vld [vmem:[%s285 + $0xdc] sm:$0xf]
      %v367 = vld [vmem:[%s285 + $0xe0] sm:$0xf]
      %v368 = vld [vmem:[%s285 + $0xe4] sm:$0xf]
      %v369 = vld [vmem:[%s285 + $0xe8] sm:$0xf]
      %v370 = vld [vmem:[%s285 + $0xec] sm:$0xf]
      %v371 = vld [vmem:[%s285 + $0xf0] sm:$0xf]
      %v372 = vld [vmem:[%s285 + $0xf4] sm:$0xf]
      %v373 = vld [vmem:[%s285 + $0xf8] sm:$0xf]
      %v374 = vld [vmem:[%s285 + $0xfc] sm:$0xf]
      %v375 = vld [vmem:[%s290] sm:$0xf]
      %v376 = vld [vmem:[%s290 + $0x4] sm:$0xf]
      %v377 = vld [vmem:[%s290 + $0x8] sm:$0xf]
      %v378 = vld [vmem:[%s290 + $0xc] sm:$0xf]
      %v379 = vld [vmem:[%s290 + $0x10] sm:$0xf]
      %v380 = vld [vmem:[%s290 + $0x14] sm:$0xf]
      %v381 = vld [vmem:[%s290 + $0x18] sm:$0xf]
      %v382 = vld [vmem:[%s290 + $0x1c] sm:$0xf]
      %v383 = vld [vmem:[%s290 + $0x20] sm:$0xf]
      %v384 = vld [vmem:[%s290 + $0x24] sm:$0xf]
      %v385 = vld [vmem:[%s290 + $0x28] sm:$0xf]
      %v386 = vld [vmem:[%s290 + $0x2c] sm:$0xf]
      %v387 = vld [vmem:[%s290 + $0x30] sm:$0xf]
      %v388 = vld [vmem:[%s290 + $0x34] sm:$0xf]
      %v389 = vld [vmem:[%s290 + $0x38] sm:$0xf]
      %v390 = vld [vmem:[%s290 + $0x3c] sm:$0xf]
      %v391 = vld [vmem:[%s293] sm:$0x1]
      %v393 = vlaneseq
      %v394 = vshrl.u32 %v393, 7
      %v395 = vsub.s32 0, %v394
      %v396 = vrot.slane %v391, %v395
      %v462 = vunpack.c.l.b16 %v311
      %v463 = vunpack.c.l.b16 %v312
      %v464 = vunpack.c.l.b16 %v313
      %v465 = vunpack.c.l.b16 %v314
      %v466 = vunpack.c.l.b16 %v315
      %v467 = vunpack.c.l.b16 %v316
      %v468 = vunpack.c.l.b16 %v317
      %v469 = vunpack.c.l.b16 %v318
      %v470 = vunpack.c.l.b16 %v319
      %v471 = vunpack.c.l.b16 %v320
      %v472 = vunpack.c.l.b16 %v321
      %v473 = vunpack.c.l.b16 %v322
      %v474 = vunpack.c.l.b16 %v323
      %v475 = vunpack.c.l.b16 %v324
      %v476 = vunpack.c.l.b16 %v325
      %v477 = vunpack.c.l.b16 %v326
      %v478 = vunpack.c.l.b16 %v327
      %v479 = vunpack.c.l.b16 %v328
      %v480 = vunpack.c.l.b16 %v329
      %v481 = vunpack.c.l.b16 %v330
      %v482 = vunpack.c.l.b16 %v331
      %v483 = vunpack.c.l.b16 %v332
      %v484 = vunpack.c.l.b16 %v333
      %v485 = vunpack.c.l.b16 %v334
      %v486 = vunpack.c.l.b16 %v335
      %v487 = vunpack.c.l.b16 %v336
      %v488 = vunpack.c.l.b16 %v337
      %v489 = vunpack.c.l.b16 %v338
      %v490 = vunpack.c.l.b16 %v339
      %v491 = vunpack.c.l.b16 %v340
      %v492 = vunpack.c.l.b16 %v341
      %v493 = vunpack.c.l.b16 %v342
      %v494 = vunpack.c.l.b16 %v343
      %v495 = vunpack.c.l.b16 %v344
      %v496 = vunpack.c.l.b16 %v345
      %v497 = vunpack.c.l.b16 %v346
      %v498 = vunpack.c.l.b16 %v347
      %v499 = vunpack.c.l.b16 %v348
      %v500 = vunpack.c.l.b16 %v349
      %v501 = vunpack.c.l.b16 %v350
      %v502 = vunpack.c.l.b16 %v351
      %v503 = vunpack.c.l.b16 %v352
      %v504 = vunpack.c.l.b16 %v353
      %v505 = vunpack.c.l.b16 %v354
      %v506 = vunpack.c.l.b16 %v355
      %v507 = vunpack.c.l.b16 %v356
      %v508 = vunpack.c.l.b16 %v357
      %v509 = vunpack.c.l.b16 %v358
      %v510 = vunpack.c.l.b16 %v359
      %v511 = vunpack.c.l.b16 %v360
      %v512 = vunpack.c.l.b16 %v361
      %v513 = vunpack.c.l.b16 %v362
      %v514 = vunpack.c.l.b16 %v363
      %v515 = vunpack.c.l.b16 %v364
      %v516 = vunpack.c.l.b16 %v365
      %v517 = vunpack.c.l.b16 %v366
      %v518 = vunpack.c.l.b16 %v367
      %v519 = vunpack.c.l.b16 %v368
      %v520 = vunpack.c.l.b16 %v369
      %v521 = vunpack.c.l.b16 %v370
      %v522 = vunpack.c.l.b16 %v371
      %v523 = vunpack.c.l.b16 %v372
      %v524 = vunpack.c.l.b16 %v373
      %v525 = vunpack.c.l.b16 %v374
      %v526 = vpack.c.b16 %v463, %v462
      %v527 = vpack.c.b16 %v465, %v464
      %v528 = vpack.c.b16 %v467, %v466
      %v529 = vpack.c.b16 %v469, %v468
      %v530 = vpack.c.b16 %v471, %v470
      %v531 = vpack.c.b16 %v473, %v472
      %v532 = vpack.c.b16 %v475, %v474
      %v533 = vpack.c.b16 %v477, %v476
      %v534 = vpack.c.b16 %v479, %v478
      %v535 = vpack.c.b16 %v481, %v480
      %v536 = vpack.c.b16 %v483, %v482
      %v537 = vpack.c.b16 %v485, %v484
      %v538 = vpack.c.b16 %v487, %v486
      %v539 = vpack.c.b16 %v489, %v488
      %v540 = vpack.c.b16 %v491, %v490
      %v541 = vpack.c.b16 %v493, %v492
      %v542 = vpack.c.b16 %v495, %v494
      %v543 = vpack.c.b16 %v497, %v496
      %v544 = vpack.c.b16 %v499, %v498
      %v545 = vpack.c.b16 %v501, %v500
      %v546 = vpack.c.b16 %v503, %v502
      %v547 = vpack.c.b16 %v505, %v504
      %v548 = vpack.c.b16 %v507, %v506
      %v549 = vpack.c.b16 %v509, %v508
      %v550 = vpack.c.b16 %v511, %v510
      %v551 = vpack.c.b16 %v513, %v512
      %v552 = vpack.c.b16 %v515, %v514
      %v553 = vpack.c.b16 %v517, %v516
      %v554 = vpack.c.b16 %v519, %v518
      %v555 = vpack.c.b16 %v521, %v520
      %v556 = vpack.c.b16 %v523, %v522
      %v557 = vpack.c.b16 %v525, %v524
      %v606 = vunpack.c.l.b16 %v375
      %v607 = vunpack.c.l.b16 %v376
      %v608 = vunpack.c.l.b16 %v377
      %v609 = vunpack.c.l.b16 %v378
      %v610 = vunpack.c.l.b16 %v379
      %v611 = vunpack.c.l.b16 %v380
      %v612 = vunpack.c.l.b16 %v381
      %v613 = vunpack.c.l.b16 %v382
      %v614 = vunpack.c.l.b16 %v383
      %v615 = vunpack.c.l.b16 %v384
      %v616 = vunpack.c.l.b16 %v385
      %v617 = vunpack.c.l.b16 %v386
      %v618 = vunpack.c.l.b16 %v387
      %v619 = vunpack.c.l.b16 %v388
      %v620 = vunpack.c.l.b16 %v389
      %v621 = vunpack.c.l.b16 %v390
      %v622 = vpack.c.b16 %v607, %v606
      %v623 = vpack.c.b16 %v609, %v608
      %v624 = vpack.c.b16 %v611, %v610
      %v625 = vpack.c.b16 %v613, %v612
      %v626 = vpack.c.b16 %v615, %v614
      %v627 = vpack.c.b16 %v617, %v616
      %v628 = vpack.c.b16 %v619, %v618
      %v629 = vpack.c.b16 %v621, %v620
      %638 = vmatprep.subr.bf16.mxu0 0
      %639 = vmatpush1.bf16.msra.mxu0 %v629
      %640 = vmatprep.subr.bf16.mxu0 0
      %641 = vmatpush1.bf16.msra.mxu0 %v628
      %642 = vmatprep.subr.bf16.mxu0 0
      %643 = vmatpush1.bf16.msra.mxu0 %v627
      %644 = vmatprep.subr.bf16.mxu0 0
      %645 = vmatpush1.bf16.msra.mxu0 %v626
      %646 = vmatprep.subr.bf16.mxu0 0
      %647 = vmatpush1.bf16.msra.mxu0 %v625
      %648 = vmatprep.subr.bf16.mxu0 0
      %649 = vmatpush1.bf16.msra.mxu0 %v624
      %650 = vmatprep.subr.bf16.mxu0 0
      %651 = vmatpush1.bf16.msra.mxu0 %v623
      %652 = vmatprep.subr.bf16.mxu0 0
      %653 = vmatpush1.bf16.msra.mxu0 %v622
      %654 = vmatprep.subr.bf16.mxu0 0
      %655 = vmatpush2.bf16.msra.mxu0 0
      %656 = vmatprep.subr.bf16.mxu0 0
      %657 = vmatpush2.bf16.msra.mxu0 0
      %658 = vmatprep.subr.bf16.mxu0 0
      %659 = vmatpush2.bf16.msra.mxu0 0
      %660 = vmatprep.subr.bf16.mxu0 0
      %661 = vmatpush2.bf16.msra.mxu0 0
      %662 = vmatprep.subr.bf16.mxu0 0
      %663 = vmatpush2.bf16.msra.mxu0 0
      %664 = vmatprep.subr.bf16.mxu0 0
      %665 = vmatpush2.bf16.msra.mxu0 0
      %666 = vmatprep.subr.bf16.mxu0 0
      %667 = vmatpush2.bf16.msra.mxu0 0
      %668 = vmatprep.subr.bf16.mxu0 0
      %669 = vmatpush2.bf16.msra.mxu0 0
      %670 = vmatprep.mubr.bf16.mxu0 0
      %671 = vmatmul.mubr.bf16.gmra.mxu0 %v526
      %v672 = vpop.f32.mrf.mxu0
      %v673 = vadd.f32 %v396, %v672
      %v674 = vpop.f32.mrf.mxu0
      %v675 = vpop.f32.mrf.mxu0
      %v676 = vadd.f32 %v396, %v675
      %v677 = vpop.f32.mrf.mxu0
      %678 = vmatprep.mubr.bf16.mxu0 0
      %679 = vmatmul.mubr.bf16.gmra.mxu0 %v527
      %v680 = vpop.f32.mrf.mxu0
      %v681 = vadd.f32 %v396, %v680
      %v682 = vpop.f32.mrf.mxu0
      %v683 = vpop.f32.mrf.mxu0
      %v684 = vadd.f32 %v396, %v683
      %v685 = vpop.f32.mrf.mxu0
      %686 = vmatprep.mubr.bf16.mxu0 0
      %687 = vmatmul.mubr.bf16.gmra.mxu0 %v528
      %v688 = vpop.f32.mrf.mxu0
      %v689 = vadd.f32 %v396, %v688
      %v690 = vpop.f32.mrf.mxu0
      %v691 = vpop.f32.mrf.mxu0
      %v692 = vadd.f32 %v396, %v691
      %v693 = vpop.f32.mrf.mxu0
      %694 = vmatprep.mubr.bf16.mxu0 0
      %695 = vmatmul.mubr.bf16.gmra.mxu0 %v529
      %v696 = vpop.f32.mrf.mxu0
      %v697 = vadd.f32 %v396, %v696
      %v698 = vpop.f32.mrf.mxu0
      %v699 = vpop.f32.mrf.mxu0
      %v700 = vadd.f32 %v396, %v699
      %v701 = vpop.f32.mrf.mxu0
      %702 = vmatprep.mubr.bf16.mxu0 0
      %703 = vmatmul.mubr.bf16.gmra.mxu0 %v530
      %v704 = vpop.f32.mrf.mxu0
      %v705 = vadd.f32 %v396, %v704
      %v706 = vpop.f32.mrf.mxu0
      %v707 = vpop.f32.mrf.mxu0
      %v708 = vadd.f32 %v396, %v707
      %v709 = vpop.f32.mrf.mxu0
      %710 = vmatprep.mubr.bf16.mxu0 0
      %711 = vmatmul.mubr.bf16.gmra.mxu0 %v531
      %v712 = vpop.f32.mrf.mxu0
      %v713 = vadd.f32 %v396, %v712
      %v714 = vpop.f32.mrf.mxu0
      %v715 = vpop.f32.mrf.mxu0
      %v716 = vadd.f32 %v396, %v715
      %v717 = vpop.f32.mrf.mxu0
      %718 = vmatprep.mubr.bf16.mxu0 0
      %719 = vmatmul.mubr.bf16.gmra.mxu0 %v532
      %v720 = vpop.f32.mrf.mxu0
      %v721 = vadd.f32 %v396, %v720
      %v722 = vpop.f32.mrf.mxu0
      %v723 = vpop.f32.mrf.mxu0
      %v724 = vadd.f32 %v396, %v723
      %v725 = vpop.f32.mrf.mxu0
      %726 = vmatprep.mubr.bf16.mxu0 0
      %727 = vmatmul.mubr.bf16.gmra.mxu0 %v533
      %v728 = vpop.f32.mrf.mxu0
      %v729 = vadd.f32 %v396, %v728
      %v730 = vpop.f32.mrf.mxu0
      %v731 = vpop.f32.mrf.mxu0
      %v732 = vadd.f32 %v396, %v731
      %v733 = vpop.f32.mrf.mxu0
      %734 = vmatprep.mubr.bf16.mxu0 0
      %735 = vmatmul.mubr.bf16.gmra.mxu0 %v534
      %v736 = vpop.f32.mrf.mxu0
      %v737 = vadd.f32 %v396, %v736
      %v738 = vpop.f32.mrf.mxu0
      %v739 = vpop.f32.mrf.mxu0
      %v740 = vadd.f32 %v396, %v739
      %v741 = vpop.f32.mrf.mxu0
      %742 = vmatprep.mubr.bf16.mxu0 0
      %743 = vmatmul.mubr.bf16.gmra.mxu0 %v535
      %v744 = vpop.f32.mrf.mxu0
      %v745 = vadd.f32 %v396, %v744
      %v746 = vpop.f32.mrf.mxu0
      %v747 = vpop.f32.mrf.mxu0
      %v748 = vadd.f32 %v396, %v747
      %v749 = vpop.f32.mrf.mxu0
      %750 = vmatprep.mubr.bf16.mxu0 0
      %751 = vmatmul.mubr.bf16.gmra.mxu0 %v536
      %v752 = vpop.f32.mrf.mxu0
      %v753 = vadd.f32 %v396, %v752
      %v754 = vpop.f32.mrf.mxu0
      %v755 = vpop.f32.mrf.mxu0
      %v756 = vadd.f32 %v396, %v755
      %v757 = vpop.f32.mrf.mxu0
      %758 = vmatprep.mubr.bf16.mxu0 0
      %759 = vmatmul.mubr.bf16.gmra.mxu0 %v537
      %v760 = vpop.f32.mrf.mxu0
      %v761 = vadd.f32 %v396, %v760
      %v762 = vpop.f32.mrf.mxu0
      %v763 = vpop.f32.mrf.mxu0
      %v764 = vadd.f32 %v396, %v763
      %v765 = vpop.f32.mrf.mxu0
      %766 = vmatprep.mubr.bf16.mxu0 0
      %767 = vmatmul.mubr.bf16.gmra.mxu0 %v538
      %v768 = vpop.f32.mrf.mxu0
      %v769 = vadd.f32 %v396, %v768
      %v770 = vpop.f32.mrf.mxu0
      %v771 = vpop.f32.mrf.mxu0
      %v772 = vadd.f32 %v396, %v771
      %v773 = vpop.f32.mrf.mxu0
      %774 = vmatprep.mubr.bf16.mxu0 0
      %775 = vmatmul.mubr.bf16.gmra.mxu0 %v539
      %v776 = vpop.f32.mrf.mxu0
      %v777 = vadd.f32 %v396, %v776
      %v778 = vpop.f32.mrf.mxu0
      %v779 = vpop.f32.mrf.mxu0
      %v780 = vadd.f32 %v396, %v779
      %v781 = vpop.f32.mrf.mxu0
      %782 = vmatprep.mubr.bf16.mxu0 0
      %783 = vmatmul.mubr.bf16.gmra.mxu0 %v540
      %v784 = vpop.f32.mrf.mxu0
      %v785 = vadd.f32 %v396, %v784
      %v786 = vpop.f32.mrf.mxu0
      %v787 = vpop.f32.mrf.mxu0
      %v788 = vadd.f32 %v396, %v787
      %v789 = vpop.f32.mrf.mxu0
      %790 = vmatprep.mubr.bf16.mxu0 0
      %791 = vmatmul.mubr.bf16.gmra.mxu0 %v541
      %v792 = vpop.f32.mrf.mxu0
      %v793 = vadd.f32 %v396, %v792
      %v794 = vpop.f32.mrf.mxu0
      %v795 = vpop.f32.mrf.mxu0
      %v796 = vadd.f32 %v396, %v795
      %v797 = vpop.f32.mrf.mxu0
      %798 = vmatprep.mubr.bf16.mxu0 0
      %799 = vmatmul.mubr.bf16.gmra.mxu0 %v542
      %v800 = vpop.f32.mrf.mxu0
      %v801 = vadd.f32 %v396, %v800
      %v802 = vpop.f32.mrf.mxu0
      %v803 = vpop.f32.mrf.mxu0
      %v804 = vadd.f32 %v396, %v803
      %v805 = vpop.f32.mrf.mxu0
      %806 = vmatprep.mubr.bf16.mxu0 0
      %807 = vmatmul.mubr.bf16.gmra.mxu0 %v543
      %v808 = vpop.f32.mrf.mxu0
      %v809 = vadd.f32 %v396, %v808
      %v810 = vpop.f32.mrf.mxu0
      %v811 = vpop.f32.mrf.mxu0
      %v812 = vadd.f32 %v396, %v811
      %v813 = vpop.f32.mrf.mxu0
      %814 = vmatprep.mubr.bf16.mxu0 0
      %815 = vmatmul.mubr.bf16.gmra.mxu0 %v544
      %v816 = vpop.f32.mrf.mxu0
      %v817 = vadd.f32 %v396, %v816
      %v818 = vpop.f32.mrf.mxu0
      %v819 = vpop.f32.mrf.mxu0
      %v820 = vadd.f32 %v396, %v819
      %v821 = vpop.f32.mrf.mxu0
      %822 = vmatprep.mubr.bf16.mxu0 0
      %823 = vmatmul.mubr.bf16.gmra.mxu0 %v545
      %v824 = vpop.f32.mrf.mxu0
      %v825 = vadd.f32 %v396, %v824
      %v826 = vpop.f32.mrf.mxu0
      %v827 = vpop.f32.mrf.mxu0
      %v828 = vadd.f32 %v396, %v827
      %v829 = vpop.f32.mrf.mxu0
      %830 = vmatprep.mubr.bf16.mxu0 0
      %831 = vmatmul.mubr.bf16.gmra.mxu0 %v546
      %v832 = vpop.f32.mrf.mxu0
      %v833 = vadd.f32 %v396, %v832
      %v834 = vpop.f32.mrf.mxu0
      %v835 = vpop.f32.mrf.mxu0
      %v836 = vadd.f32 %v396, %v835
      %v837 = vpop.f32.mrf.mxu0
      %838 = vmatprep.mubr.bf16.mxu0 0
      %839 = vmatmul.mubr.bf16.gmra.mxu0 %v547
      %v840 = vpop.f32.mrf.mxu0
      %v841 = vadd.f32 %v396, %v840
      %v842 = vpop.f32.mrf.mxu0
      %v843 = vpop.f32.mrf.mxu0
      %v844 = vadd.f32 %v396, %v843
      %v845 = vpop.f32.mrf.mxu0
      %846 = vmatprep.mubr.bf16.mxu0 0
      %847 = vmatmul.mubr.bf16.gmra.mxu0 %v548
      %v848 = vpop.f32.mrf.mxu0
      %v849 = vadd.f32 %v396, %v848
      %v850 = vpop.f32.mrf.mxu0
      %v851 = vpop.f32.mrf.mxu0
      %v852 = vadd.f32 %v396, %v851
      %v853 = vpop.f32.mrf.mxu0
      %854 = vmatprep.mubr.bf16.mxu0 0
      %855 = vmatmul.mubr.bf16.gmra.mxu0 %v549
      %v856 = vpop.f32.mrf.mxu0
      %v857 = vadd.f32 %v396, %v856
      %v858 = vpop.f32.mrf.mxu0
      %v859 = vpop.f32.mrf.mxu0
      %v860 = vadd.f32 %v396, %v859
      %v861 = vpop.f32.mrf.mxu0
      %862 = vmatprep.mubr.bf16.mxu0 0
      %863 = vmatmul.mubr.bf16.gmra.mxu0 %v550
      %v864 = vpop.f32.mrf.mxu0
      %v865 = vadd.f32 %v396, %v864
      %v866 = vpop.f32.mrf.mxu0
      %v867 = vpop.f32.mrf.mxu0
      %v868 = vadd.f32 %v396, %v867
      %v869 = vpop.f32.mrf.mxu0
      %870 = vmatprep.mubr.bf16.mxu0 0
      %871 = vmatmul.mubr.bf16.gmra.mxu0 %v551
      %v872 = vpop.f32.mrf.mxu0
      %v873 = vadd.f32 %v396, %v872
      %v874 = vpop.f32.mrf.mxu0
      %v875 = vpop.f32.mrf.mxu0
      %v876 = vadd.f32 %v396, %v875
      %v877 = vpop.f32.mrf.mxu0
      %878 = vmatprep.mubr.bf16.mxu0 0
      %879 = vmatmul.mubr.bf16.gmra.mxu0 %v552
      %v880 = vpop.f32.mrf.mxu0
      %v881 = vadd.f32 %v396, %v880
      %v882 = vpop.f32.mrf.mxu0
      %v883 = vpop.f32.mrf.mxu0
      %v884 = vadd.f32 %v396, %v883
      %v885 = vpop.f32.mrf.mxu0
      %886 = vmatprep.mubr.bf16.mxu0 0
      %887 = vmatmul.mubr.bf16.gmra.mxu0 %v553
      %v888 = vpop.f32.mrf.mxu0
      %v889 = vadd.f32 %v396, %v888
      %v890 = vpop.f32.mrf.mxu0
      %v891 = vpop.f32.mrf.mxu0
      %v892 = vadd.f32 %v396, %v891
      %v893 = vpop.f32.mrf.mxu0
      %894 = vmatprep.mubr.bf16.mxu0 0
      %895 = vmatmul.mubr.bf16.gmra.mxu0 %v554
      %v896 = vpop.f32.mrf.mxu0
      %v897 = vadd.f32 %v396, %v896
      %v898 = vpop.f32.mrf.mxu0
      %v899 = vpop.f32.mrf.mxu0
      %v900 = vadd.f32 %v396, %v899
      %v901 = vpop.f32.mrf.mxu0
      %902 = vmatprep.mubr.bf16.mxu0 0
      %903 = vmatmul.mubr.bf16.gmra.mxu0 %v555
      %v904 = vpop.f32.mrf.mxu0
      %v905 = vadd.f32 %v396, %v904
      %v906 = vpop.f32.mrf.mxu0
      %v907 = vpop.f32.mrf.mxu0
      %v908 = vadd.f32 %v396, %v907
      %v909 = vpop.f32.mrf.mxu0
      %910 = vmatprep.mubr.bf16.mxu0 0
      %911 = vmatmul.mubr.bf16.gmra.mxu0 %v556
      %v912 = vpop.f32.mrf.mxu0
      %v913 = vadd.f32 %v396, %v912
      %v914 = vpop.f32.mrf.mxu0
      %v915 = vpop.f32.mrf.mxu0
      %v916 = vadd.f32 %v396, %v915
      %v917 = vpop.f32.mrf.mxu0
      %918 = vmatprep.mubr.bf16.mxu0 0
      %919 = vmatmul.mubr.bf16.gmra.mxu0 %v557
      %v920 = vpop.f32.mrf.mxu0
      %v921 = vadd.f32 %v396, %v920
      %v922 = vpop.f32.mrf.mxu0
      %v923 = vpop.f32.mrf.mxu0
      %v924 = vadd.f32 %v396, %v923
      %v925 = vpop.f32.mrf.mxu0
      %926 = vdwg.mxu0
      %v927 = vld [vmem:[%s297] sm:$0xf]
      %v928 = vld [vmem:[%s297 + $0x4] sm:$0xf]
      %v929 = vld [vmem:[%s297 + $0x8] sm:$0xf]
      %v930 = vld [vmem:[%s297 + $0xc] sm:$0xf]
      %v931 = vld [vmem:[%s297 + $0x10] sm:$0xf]
      %v932 = vld [vmem:[%s297 + $0x14] sm:$0xf]
      %v933 = vld [vmem:[%s297 + $0x18] sm:$0xf]
      %v934 = vld [vmem:[%s297 + $0x1c] sm:$0xf]
      %v935 = vld [vmem:[%s297 + $0x20] sm:$0xf]
      %v936 = vld [vmem:[%s297 + $0x24] sm:$0xf]
      %v937 = vld [vmem:[%s297 + $0x28] sm:$0xf]
      %v938 = vld [vmem:[%s297 + $0x2c] sm:$0xf]
      %v939 = vld [vmem:[%s297 + $0x30] sm:$0xf]
      %v940 = vld [vmem:[%s297 + $0x34] sm:$0xf]
      %v941 = vld [vmem:[%s297 + $0x38] sm:$0xf]
      %v942 = vld [vmem:[%s297 + $0x3c] sm:$0xf]
      %v943 = vld [vmem:[%s300] sm:$0x1]
      %v945 = vlaneseq
      %v946 = vshrl.u32 %v945, 7
      %v947 = vsub.s32 0, %v946
      %v948 = vrot.slane %v943, %v947
      %v966 = vunpack.c.l.b16 %v927
      %v967 = vunpack.c.l.b16 %v928
      %v968 = vunpack.c.l.b16 %v929
      %v969 = vunpack.c.l.b16 %v930
      %v970 = vunpack.c.l.b16 %v931
      %v971 = vunpack.c.l.b16 %v932
      %v972 = vunpack.c.l.b16 %v933
      %v973 = vunpack.c.l.b16 %v934
      %v974 = vunpack.c.l.b16 %v935
      %v975 = vunpack.c.l.b16 %v936
      %v976 = vunpack.c.l.b16 %v937
      %v977 = vunpack.c.l.b16 %v938
      %v978 = vunpack.c.l.b16 %v939
      %v979 = vunpack.c.l.b16 %v940
      %v980 = vunpack.c.l.b16 %v941
      %v981 = vunpack.c.l.b16 %v942
      %v982 = vpack.c.b16 %v967, %v966
      %v983 = vpack.c.b16 %v969, %v968
      %v984 = vpack.c.b16 %v971, %v970
      %v985 = vpack.c.b16 %v973, %v972
      %v986 = vpack.c.b16 %v975, %v974
      %v987 = vpack.c.b16 %v977, %v976
      %v988 = vpack.c.b16 %v979, %v978
      %v989 = vpack.c.b16 %v981, %v980
      %998 = vmatprep.subr.bf16.mxu0 0
      %999 = vmatpush1.bf16.msra.mxu0 %v989
      %1000 = vmatprep.subr.bf16.mxu0 0
      %1001 = vmatpush1.bf16.msra.mxu0 %v988
      %1002 = vmatprep.subr.bf16.mxu0 0
      %1003 = vmatpush1.bf16.msra.mxu0 %v987
      %1004 = vmatprep.subr.bf16.mxu0 0
      %1005 = vmatpush1.bf16.msra.mxu0 %v986
      %1006 = vmatprep.subr.bf16.mxu0 0
      %1007 = vmatpush1.bf16.msra.mxu0 %v985
      %1008 = vmatprep.subr.bf16.mxu0 0
      %1009 = vmatpush1.bf16.msra.mxu0 %v984
      %1010 = vmatprep.subr.bf16.mxu0 0
      %1011 = vmatpush1.bf16.msra.mxu0 %v983
      %1012 = vmatprep.subr.bf16.mxu0 0
      %1013 = vmatpush1.bf16.msra.mxu0 %v982
      %1014 = vmatprep.subr.bf16.mxu0 0
      %1015 = vmatpush2.bf16.msra.mxu0 0
      %1016 = vmatprep.subr.bf16.mxu0 0
      %1017 = vmatpush2.bf16.msra.mxu0 0
      %1018 = vmatprep.subr.bf16.mxu0 0
      %1019 = vmatpush2.bf16.msra.mxu0 0
      %1020 = vmatprep.subr.bf16.mxu0 0
      %1021 = vmatpush2.bf16.msra.mxu0 0
      %1022 = vmatprep.subr.bf16.mxu0 0
      %1023 = vmatpush2.bf16.msra.mxu0 0
      %1024 = vmatprep.subr.bf16.mxu0 0
      %1025 = vmatpush2.bf16.msra.mxu0 0
      %1026 = vmatprep.subr.bf16.mxu0 0
      %1027 = vmatpush2.bf16.msra.mxu0 0
      %1028 = vmatprep.subr.bf16.mxu0 0
      %1029 = vmatpush2.bf16.msra.mxu0 0
      %1030 = vmatprep.mubr.bf16.mxu0 0
      %1031 = vmatmul.mubr.bf16.gmra.mxu0 %v526
      %v1032 = vpop.f32.mrf.mxu0
      %v1033 = vadd.f32 %v948, %v1032
      %v1034 = vpop.f32.mrf.mxu0
      %v1035 = vpop.f32.mrf.mxu0
      %v1036 = vadd.f32 %v948, %v1035
      %v1037 = vpop.f32.mrf.mxu0
      %1038 = vmatprep.mubr.bf16.mxu0 0
      %1039 = vmatmul.mubr.bf16.gmra.mxu0 %v527
      %v1040 = vpop.f32.mrf.mxu0
      %v1041 = vadd.f32 %v948, %v1040
      %v1042 = vpop.f32.mrf.mxu0
      %v1043 = vpop.f32.mrf.mxu0
      %v1044 = vadd.f32 %v948, %v1043
      %v1045 = vpop.f32.mrf.mxu0
      %1046 = vmatprep.mubr.bf16.mxu0 0
      %1047 = vmatmul.mubr.bf16.gmra.mxu0 %v528
      %v1048 = vpop.f32.mrf.mxu0
      %v1049 = vadd.f32 %v948, %v1048
      %v1050 = vpop.f32.mrf.mxu0
      %v1051 = vpop.f32.mrf.mxu0
      %v1052 = vadd.f32 %v948, %v1051
      %v1053 = vpop.f32.mrf.mxu0
      %1054 = vmatprep.mubr.bf16.mxu0 0
      %1055 = vmatmul.mubr.bf16.gmra.mxu0 %v529
      %v1056 = vpop.f32.mrf.mxu0
      %v1057 = vadd.f32 %v948, %v1056
      %v1058 = vpop.f32.mrf.mxu0
      %v1059 = vpop.f32.mrf.mxu0
      %v1060 = vadd.f32 %v948, %v1059
      %v1061 = vpop.f32.mrf.mxu0
      %1062 = vmatprep.mubr.bf16.mxu0 0
      %1063 = vmatmul.mubr.bf16.gmra.mxu0 %v530
      %v1064 = vpop.f32.mrf.mxu0
      %v1065 = vadd.f32 %v948, %v1064
      %v1066 = vpop.f32.mrf.mxu0
      %v1067 = vpop.f32.mrf.mxu0
      %v1068 = vadd.f32 %v948, %v1067
      %v1069 = vpop.f32.mrf.mxu0
      %1070 = vmatprep.mubr.bf16.mxu0 0
      %1071 = vmatmul.mubr.bf16.gmra.mxu0 %v531
      %v1072 = vpop.f32.mrf.mxu0
      %v1073 = vadd.f32 %v948, %v1072
      %v1074 = vpop.f32.mrf.mxu0
      %v1075 = vpop.f32.mrf.mxu0
      %v1076 = vadd.f32 %v948, %v1075
      %v1077 = vpop.f32.mrf.mxu0
      %1078 = vmatprep.mubr.bf16.mxu0 0
      %1079 = vmatmul.mubr.bf16.gmra.mxu0 %v532
      %v1080 = vpop.f32.mrf.mxu0
      %v1081 = vadd.f32 %v948, %v1080
      %v1082 = vpop.f32.mrf.mxu0
      %v1083 = vpop.f32.mrf.mxu0
      %v1084 = vadd.f32 %v948, %v1083
      %v1085 = vpop.f32.mrf.mxu0
      %1086 = vmatprep.mubr.bf16.mxu0 0
      %1087 = vmatmul.mubr.bf16.gmra.mxu0 %v533
      %v1088 = vpop.f32.mrf.mxu0
      %v1089 = vadd.f32 %v948, %v1088
      %v1090 = vpop.f32.mrf.mxu0
      %v1091 = vpop.f32.mrf.mxu0
      %v1092 = vadd.f32 %v948, %v1091
      %v1093 = vpop.f32.mrf.mxu0
      %1094 = vmatprep.mubr.bf16.mxu0 0
      %1095 = vmatmul.mubr.bf16.gmra.mxu0 %v534
      %v1096 = vpop.f32.mrf.mxu0
      %v1097 = vadd.f32 %v948, %v1096
      %v1098 = vpop.f32.mrf.mxu0
      %v1099 = vpop.f32.mrf.mxu0
      %v1100 = vadd.f32 %v948, %v1099
      %v1101 = vpop.f32.mrf.mxu0
      %1102 = vmatprep.mubr.bf16.mxu0 0
      %1103 = vmatmul.mubr.bf16.gmra.mxu0 %v535
      %v1104 = vpop.f32.mrf.mxu0
      %v1105 = vadd.f32 %v948, %v1104
      %v1106 = vpop.f32.mrf.mxu0
      %v1107 = vpop.f32.mrf.mxu0
      %v1108 = vadd.f32 %v948, %v1107
      %v1109 = vpop.f32.mrf.mxu0
      %1110 = vmatprep.mubr.bf16.mxu0 0
      %1111 = vmatmul.mubr.bf16.gmra.mxu0 %v536
      %v1112 = vpop.f32.mrf.mxu0
      %v1113 = vadd.f32 %v948, %v1112
      %v1114 = vpop.f32.mrf.mxu0
      %v1115 = vpop.f32.mrf.mxu0
      %v1116 = vadd.f32 %v948, %v1115
      %v1117 = vpop.f32.mrf.mxu0
      %1118 = vmatprep.mubr.bf16.mxu0 0
      %1119 = vmatmul.mubr.bf16.gmra.mxu0 %v537
      %v1120 = vpop.f32.mrf.mxu0
      %v1121 = vadd.f32 %v948, %v1120
      %v1122 = vpop.f32.mrf.mxu0
      %v1123 = vpop.f32.mrf.mxu0
      %v1124 = vadd.f32 %v948, %v1123
      %v1125 = vpop.f32.mrf.mxu0
      %1126 = vmatprep.mubr.bf16.mxu0 0
      %1127 = vmatmul.mubr.bf16.gmra.mxu0 %v538
      %v1128 = vpop.f32.mrf.mxu0
      %v1129 = vadd.f32 %v948, %v1128
      %v1130 = vpop.f32.mrf.mxu0
      %v1131 = vpop.f32.mrf.mxu0
      %v1132 = vadd.f32 %v948, %v1131
      %v1133 = vpop.f32.mrf.mxu0
      %1134 = vmatprep.mubr.bf16.mxu0 0
      %1135 = vmatmul.mubr.bf16.gmra.mxu0 %v539
      %v1136 = vpop.f32.mrf.mxu0
      %v1137 = vadd.f32 %v948, %v1136
      %v1138 = vpop.f32.mrf.mxu0
      %v1139 = vpop.f32.mrf.mxu0
      %v1140 = vadd.f32 %v948, %v1139
      %v1141 = vpop.f32.mrf.mxu0
      %1142 = vmatprep.mubr.bf16.mxu0 0
      %1143 = vmatmul.mubr.bf16.gmra.mxu0 %v540
      %v1144 = vpop.f32.mrf.mxu0
      %v1145 = vadd.f32 %v948, %v1144
      %v1146 = vpop.f32.mrf.mxu0
      %v1147 = vpop.f32.mrf.mxu0
      %v1148 = vadd.f32 %v948, %v1147
      %v1149 = vpop.f32.mrf.mxu0
      %1150 = vmatprep.mubr.bf16.mxu0 0
      %1151 = vmatmul.mubr.bf16.gmra.mxu0 %v541
      %v1152 = vpop.f32.mrf.mxu0
      %v1153 = vadd.f32 %v948, %v1152
      %v1154 = vpop.f32.mrf.mxu0
      %v1155 = vpop.f32.mrf.mxu0
      %v1156 = vadd.f32 %v948, %v1155
      %v1157 = vpop.f32.mrf.mxu0
      %1158 = vmatprep.mubr.bf16.mxu0 0
      %1159 = vmatmul.mubr.bf16.gmra.mxu0 %v542
      %v1160 = vpop.f32.mrf.mxu0
      %v1161 = vadd.f32 %v948, %v1160
      %v1162 = vpop.f32.mrf.mxu0
      %v1163 = vpop.f32.mrf.mxu0
      %v1164 = vadd.f32 %v948, %v1163
      %v1165 = vpop.f32.mrf.mxu0
      %1166 = vmatprep.mubr.bf16.mxu0 0
      %1167 = vmatmul.mubr.bf16.gmra.mxu0 %v543
      %v1168 = vpop.f32.mrf.mxu0
      %v1169 = vadd.f32 %v948, %v1168
      %v1170 = vpop.f32.mrf.mxu0
      %v1171 = vpop.f32.mrf.mxu0
      %v1172 = vadd.f32 %v948, %v1171
      %v1173 = vpop.f32.mrf.mxu0
      %1174 = vmatprep.mubr.bf16.mxu0 0
      %1175 = vmatmul.mubr.bf16.gmra.mxu0 %v544
      %v1176 = vpop.f32.mrf.mxu0
      %v1177 = vadd.f32 %v948, %v1176
      %v1178 = vpop.f32.mrf.mxu0
      %v1179 = vpop.f32.mrf.mxu0
      %v1180 = vadd.f32 %v948, %v1179
      %v1181 = vpop.f32.mrf.mxu0
      %1182 = vmatprep.mubr.bf16.mxu0 0
      %1183 = vmatmul.mubr.bf16.gmra.mxu0 %v545
      %v1184 = vpop.f32.mrf.mxu0
      %v1185 = vadd.f32 %v948, %v1184
      %v1186 = vpop.f32.mrf.mxu0
      %v1187 = vpop.f32.mrf.mxu0
      %v1188 = vadd.f32 %v948, %v1187
      %v1189 = vpop.f32.mrf.mxu0
      %1190 = vmatprep.mubr.bf16.mxu0 0
      %1191 = vmatmul.mubr.bf16.gmra.mxu0 %v546
      %v1192 = vpop.f32.mrf.mxu0
      %v1193 = vadd.f32 %v948, %v1192
      %v1194 = vpop.f32.mrf.mxu0
      %v1195 = vpop.f32.mrf.mxu0
      %v1196 = vadd.f32 %v948, %v1195
      %v1197 = vpop.f32.mrf.mxu0
      %1198 = vmatprep.mubr.bf16.mxu0 0
      %1199 = vmatmul.mubr.bf16.gmra.mxu0 %v547
      %v1200 = vpop.f32.mrf.mxu0
      %v1201 = vadd.f32 %v948, %v1200
      %v1202 = vpop.f32.mrf.mxu0
      %v1203 = vpop.f32.mrf.mxu0
      %v1204 = vadd.f32 %v948, %v1203
      %v1205 = vpop.f32.mrf.mxu0
      %1206 = vmatprep.mubr.bf16.mxu0 0
      %1207 = vmatmul.mubr.bf16.gmra.mxu0 %v548
      %v1208 = vpop.f32.mrf.mxu0
      %v1209 = vadd.f32 %v948, %v1208
      %v1210 = vpop.f32.mrf.mxu0
      %v1211 = vpop.f32.mrf.mxu0
      %v1212 = vadd.f32 %v948, %v1211
      %v1213 = vpop.f32.mrf.mxu0
      %1214 = vmatprep.mubr.bf16.mxu0 0
      %1215 = vmatmul.mubr.bf16.gmra.mxu0 %v549
      %v1216 = vpop.f32.mrf.mxu0
      %v1217 = vadd.f32 %v948, %v1216
      %v1218 = vpop.f32.mrf.mxu0
      %v1219 = vpop.f32.mrf.mxu0
      %v1220 = vadd.f32 %v948, %v1219
      %v1221 = vpop.f32.mrf.mxu0
      %1222 = vmatprep.mubr.bf16.mxu0 0
      %1223 = vmatmul.mubr.bf16.gmra.mxu0 %v550
      %v1224 = vpop.f32.mrf.mxu0
      %v1225 = vadd.f32 %v948, %v1224
      %v1226 = vpop.f32.mrf.mxu0
      %v1227 = vpop.f32.mrf.mxu0
      %v1228 = vadd.f32 %v948, %v1227
      %v1229 = vpop.f32.mrf.mxu0
      %1230 = vmatprep.mubr.bf16.mxu0 0
      %1231 = vmatmul.mubr.bf16.gmra.mxu0 %v551
      %v1232 = vpop.f32.mrf.mxu0
      %v1233 = vadd.f32 %v948, %v1232
      %v1234 = vpop.f32.mrf.mxu0
      %v1235 = vpop.f32.mrf.mxu0
      %v1236 = vadd.f32 %v948, %v1235
      %v1237 = vpop.f32.mrf.mxu0
      %1238 = vmatprep.mubr.bf16.mxu0 0
      %1239 = vmatmul.mubr.bf16.gmra.mxu0 %v552
      %v1240 = vpop.f32.mrf.mxu0
      %v1241 = vadd.f32 %v948, %v1240
      %v1242 = vpop.f32.mrf.mxu0
      %v1243 = vpop.f32.mrf.mxu0
      %v1244 = vadd.f32 %v948, %v1243
      %v1245 = vpop.f32.mrf.mxu0
      %1246 = vmatprep.mubr.bf16.mxu0 0
      %1247 = vmatmul.mubr.bf16.gmra.mxu0 %v553
      %v1248 = vpop.f32.mrf.mxu0
      %v1249 = vadd.f32 %v948, %v1248
      %v1250 = vpop.f32.mrf.mxu0
      %v1251 = vpop.f32.mrf.mxu0
      %v1252 = vadd.f32 %v948, %v1251
      %v1253 = vpop.f32.mrf.mxu0
      %1254 = vmatprep.mubr.bf16.mxu0 0
      %1255 = vmatmul.mubr.bf16.gmra.mxu0 %v554
      %v1256 = vpop.f32.mrf.mxu0
      %v1257 = vadd.f32 %v948, %v1256
      %v1258 = vpop.f32.mrf.mxu0
      %v1259 = vpop.f32.mrf.mxu0
      %v1260 = vadd.f32 %v948, %v1259
      %v1261 = vpop.f32.mrf.mxu0
      %1262 = vmatprep.mubr.bf16.mxu0 0
      %1263 = vmatmul.mubr.bf16.gmra.mxu0 %v555
      %v1264 = vpop.f32.mrf.mxu0
      %v1265 = vadd.f32 %v948, %v1264
      %v1266 = vpop.f32.mrf.mxu0
      %v1267 = vpop.f32.mrf.mxu0
      %v1268 = vadd.f32 %v948, %v1267
      %v1269 = vpop.f32.mrf.mxu0
      %1270 = vmatprep.mubr.bf16.mxu0 0
      %1271 = vmatmul.mubr.bf16.gmra.mxu0 %v556
      %v1272 = vpop.f32.mrf.mxu0
      %v1273 = vadd.f32 %v948, %v1272
      %v1274 = vpop.f32.mrf.mxu0
      %v1275 = vpop.f32.mrf.mxu0
      %v1276 = vadd.f32 %v948, %v1275
      %v1277 = vpop.f32.mrf.mxu0
      %1278 = vmatprep.mubr.bf16.mxu0 0
      %1279 = vmatmul.mubr.bf16.gmra.mxu0 %v557
      %v1280 = vpop.f32.mrf.mxu0
      %v1281 = vadd.f32 %v948, %v1280
      %v1282 = vpop.f32.mrf.mxu0
      %v1283 = vpop.f32.mrf.mxu0
      %v1284 = vadd.f32 %v948, %v1283
      %v1285 = vpop.f32.mrf.mxu0
      %1286 = vdwg.mxu0
      %vm1287 = vcmp.gt.f32.partialorder %v673, 0.0
      %vm1288 = vcmp.gt.f32.partialorder %v676, 0.0
      %vm1289 = vcmp.gt.f32.partialorder %v681, 0.0
      %vm1290 = vcmp.gt.f32.partialorder %v684, 0.0
      %vm1291 = vcmp.gt.f32.partialorder %v689, 0.0
      %vm1292 = vcmp.gt.f32.partialorder %v692, 0.0
      %vm1293 = vcmp.gt.f32.partialorder %v697, 0.0
      %vm1294 = vcmp.gt.f32.partialorder %v700, 0.0
      %vm1295 = vcmp.gt.f32.partialorder %v705, 0.0
      %vm1296 = vcmp.gt.f32.partialorder %v708, 0.0
      %vm1297 = vcmp.gt.f32.partialorder %v713, 0.0
      %vm1298 = vcmp.gt.f32.partialorder %v716, 0.0
      %vm1299 = vcmp.gt.f32.partialorder %v721, 0.0
      %vm1300 = vcmp.gt.f32.partialorder %v724, 0.0
      %vm1301 = vcmp.gt.f32.partialorder %v729, 0.0
      %vm1302 = vcmp.gt.f32.partialorder %v732, 0.0
      %vm1303 = vcmp.gt.f32.partialorder %v737, 0.0
      %vm1304 = vcmp.gt.f32.partialorder %v740, 0.0
      %vm1305 = vcmp.gt.f32.partialorder %v745, 0.0
      %vm1306 = vcmp.gt.f32.partialorder %v748, 0.0
      %vm1307 = vcmp.gt.f32.partialorder %v753, 0.0
      %vm1308 = vcmp.gt.f32.partialorder %v756, 0.0
      %vm1309 = vcmp.gt.f32.partialorder %v761, 0.0
      %vm1310 = vcmp.gt.f32.partialorder %v764, 0.0
      %vm1311 = vcmp.gt.f32.partialorder %v769, 0.0
      %vm1312 = vcmp.gt.f32.partialorder %v772, 0.0
      %vm1313 = vcmp.gt.f32.partialorder %v777, 0.0
      %vm1314 = vcmp.gt.f32.partialorder %v780, 0.0
      %vm1315 = vcmp.gt.f32.partialorder %v785, 0.0
      %vm1316 = vcmp.gt.f32.partialorder %v788, 0.0
      %vm1317 = vcmp.gt.f32.partialorder %v793, 0.0
      %vm1318 = vcmp.gt.f32.partialorder %v796, 0.0
      %vm1319 = vcmp.gt.f32.partialorder %v801, 0.0
      %vm1320 = vcmp.gt.f32.partialorder %v804, 0.0
      %vm1321 = vcmp.gt.f32.partialorder %v809, 0.0
      %vm1322 = vcmp.gt.f32.partialorder %v812, 0.0
      %vm1323 = vcmp.gt.f32.partialorder %v817, 0.0
      %vm1324 = vcmp.gt.f32.partialorder %v820, 0.0
      %vm1325 = vcmp.gt.f32.partialorder %v825, 0.0
      %vm1326 = vcmp.gt.f32.partialorder %v828, 0.0
      %vm1327 = vcmp.gt.f32.partialorder %v833, 0.0
      %vm1328 = vcmp.gt.f32.partialorder %v836, 0.0
      %vm1329 = vcmp.gt.f32.partialorder %v841, 0.0
      %vm1330 = vcmp.gt.f32.partialorder %v844, 0.0
      %vm1331 = vcmp.gt.f32.partialorder %v849, 0.0
      %vm1332 = vcmp.gt.f32.partialorder %v852, 0.0
      %vm1333 = vcmp.gt.f32.partialorder %v857, 0.0
      %vm1334 = vcmp.gt.f32.partialorder %v860, 0.0
      %vm1335 = vcmp.gt.f32.partialorder %v865, 0.0
      %vm1336 = vcmp.gt.f32.partialorder %v868, 0.0
      %vm1337 = vcmp.gt.f32.partialorder %v873, 0.0
      %vm1338 = vcmp.gt.f32.partialorder %v876, 0.0
      %vm1339 = vcmp.gt.f32.partialorder %v881, 0.0
      %vm1340 = vcmp.gt.f32.partialorder %v884, 0.0
      %vm1341 = vcmp.gt.f32.partialorder %v889, 0.0
      %vm1342 = vcmp.gt.f32.partialorder %v892, 0.0
      %vm1343 = vcmp.gt.f32.partialorder %v897, 0.0
      %vm1344 = vcmp.gt.f32.partialorder %v900, 0.0
      %vm1345 = vcmp.gt.f32.partialorder %v905, 0.0
      %vm1346 = vcmp.gt.f32.partialorder %v908, 0.0
      %vm1347 = vcmp.gt.f32.partialorder %v913, 0.0
      %vm1348 = vcmp.gt.f32.partialorder %v916, 0.0
      %vm1349 = vcmp.gt.f32.partialorder %v921, 0.0
      %vm1350 = vcmp.gt.f32.partialorder %v924, 0.0
      %v1351 = vmul.f32 %v673, 1.442695
      %v1352 = vpow.pop %v1351
      %v1353 = vmul.f32 %v676, 1.442695
      %v1354 = vpow.pop %v1353
      %v1355 = vmul.f32 %v681, 1.442695
      %v1356 = vpow.pop %v1355
      %v1357 = vmul.f32 %v684, 1.442695
      %v1358 = vpow.pop %v1357
      %v1359 = vmul.f32 %v689, 1.442695
      %v1360 = vpow.pop %v1359
      %v1361 = vmul.f32 %v692, 1.442695
      %v1362 = vpow.pop %v1361
      %v1363 = vmul.f32 %v697, 1.442695
      %v1364 = vpow.pop %v1363
      %v1365 = vmul.f32 %v700, 1.442695
      %v1366 = vpow.pop %v1365
      %v1367 = vmul.f32 %v705, 1.442695
      %v1368 = vpow.pop %v1367
      %v1369 = vmul.f32 %v708, 1.442695
      %v1370 = vpow.pop %v1369
      %v1371 = vmul.f32 %v713, 1.442695
      %v1372 = vpow.pop %v1371
      %v1373 = vmul.f32 %v716, 1.442695
      %v1374 = vpow.pop %v1373
      %v1375 = vmul.f32 %v721, 1.442695
      %v1376 = vpow.pop %v1375
      %v1377 = vmul.f32 %v724, 1.442695
      %v1378 = vpow.pop %v1377
      %v1379 = vmul.f32 %v729, 1.442695
      %v1380 = vpow.pop %v1379
      %v1381 = vmul.f32 %v732, 1.442695
      %v1382 = vpow.pop %v1381
      %v1383 = vmul.f32 %v737, 1.442695
      %v1384 = vpow.pop %v1383
      %v1385 = vmul.f32 %v740, 1.442695
      %v1386 = vpow.pop %v1385
      %v1387 = vmul.f32 %v745, 1.442695
      %v1388 = vpow.pop %v1387
      %v1389 = vmul.f32 %v748, 1.442695
      %v1390 = vpow.pop %v1389
      %v1391 = vmul.f32 %v753, 1.442695
      %v1392 = vpow.pop %v1391
      %v1393 = vmul.f32 %v756, 1.442695
      %v1394 = vpow.pop %v1393
      %v1395 = vmul.f32 %v761, 1.442695
      %v1396 = vpow.pop %v1395
      %v1397 = vmul.f32 %v764, 1.442695
      %v1398 = vpow.pop %v1397
      %v1399 = vmul.f32 %v769, 1.442695
      %v1400 = vpow.pop %v1399
      %v1401 = vmul.f32 %v772, 1.442695
      %v1402 = vpow.pop %v1401
      %v1403 = vmul.f32 %v777, 1.442695
      %v1404 = vpow.pop %v1403
      %v1405 = vmul.f32 %v780, 1.442695
      %v1406 = vpow.pop %v1405
      %v1407 = vmul.f32 %v785, 1.442695
      %v1408 = vpow.pop %v1407
      %v1409 = vmul.f32 %v788, 1.442695
      %v1410 = vpow.pop %v1409
      %v1411 = vmul.f32 %v793, 1.442695
      %v1412 = vpow.pop %v1411
      %v1413 = vmul.f32 %v796, 1.442695
      %v1414 = vpow.pop %v1413
      %v1415 = vmul.f32 %v801, 1.442695
      %v1416 = vpow.pop %v1415
      %v1417 = vmul.f32 %v804, 1.442695
      %v1418 = vpow.pop %v1417
      %v1419 = vmul.f32 %v809, 1.442695
      %v1420 = vpow.pop %v1419
      %v1421 = vmul.f32 %v812, 1.442695
      %v1422 = vpow.pop %v1421
      %v1423 = vmul.f32 %v817, 1.442695
      %v1424 = vpow.pop %v1423
      %v1425 = vmul.f32 %v820, 1.442695
      %v1426 = vpow.pop %v1425
      %v1427 = vmul.f32 %v825, 1.442695
      %v1428 = vpow.pop %v1427
      %v1429 = vmul.f32 %v828, 1.442695
      %v1430 = vpow.pop %v1429
      %v1431 = vmul.f32 %v833, 1.442695
      %v1432 = vpow.pop %v1431
      %v1433 = vmul.f32 %v836, 1.442695
      %v1434 = vpow.pop %v1433
      %v1435 = vmul.f32 %v841, 1.442695
      %v1436 = vpow.pop %v1435
      %v1437 = vmul.f32 %v844, 1.442695
      %v1438 = vpow.pop %v1437
      %v1439 = vmul.f32 %v849, 1.442695
      %v1440 = vpow.pop %v1439
      %v1441 = vmul.f32 %v852, 1.442695
      %v1442 = vpow.pop %v1441
      %v1443 = vmul.f32 %v857, 1.442695
      %v1444 = vpow.pop %v1443
      %v1445 = vmul.f32 %v860, 1.442695
      %v1446 = vpow.pop %v1445
      %v1447 = vmul.f32 %v865, 1.442695
      %v1448 = vpow.pop %v1447
      %v1449 = vmul.f32 %v868, 1.442695
      %v1450 = vpow.pop %v1449
      %v1451 = vmul.f32 %v873, 1.442695
      %v1452 = vpow.pop %v1451
      %v1453 = vmul.f32 %v876, 1.442695
      %v1454 = vpow.pop %v1453
      %v1455 = vmul.f32 %v881, 1.442695
      %v1456 = vpow.pop %v1455
      %v1457 = vmul.f32 %v884, 1.442695
      %v1458 = vpow.pop %v1457
      %v1459 = vmul.f32 %v889, 1.442695
      %v1460 = vpow.pop %v1459
      %v1461 = vmul.f32 %v892, 1.442695
      %v1462 = vpow.pop %v1461
      %v1463 = vmul.f32 %v897, 1.442695
      %v1464 = vpow.pop %v1463
      %v1465 = vmul.f32 %v900, 1.442695
      %v1466 = vpow.pop %v1465
      %v1467 = vmul.f32 %v905, 1.442695
      %v1468 = vpow.pop %v1467
      %v1469 = vmul.f32 %v908, 1.442695
      %v1470 = vpow.pop %v1469
      %v1471 = vmul.f32 %v913, 1.442695
      %v1472 = vpow.pop %v1471
      %v1473 = vmul.f32 %v916, 1.442695
      %v1474 = vpow.pop %v1473
      %v1475 = vmul.f32 %v921, 1.442695
      %v1476 = vpow.pop %v1475
      %v1477 = vmul.f32 %v924, 1.442695
      %v1478 = vpow.pop %v1477
      %v1479 = vsub.f32 %v1352, 1.0
      %v1480 = vsub.f32 %v1354, 1.0
      %v1481 = vsub.f32 %v1356, 1.0
      %v1482 = vsub.f32 %v1358, 1.0
      %v1483 = vsub.f32 %v1360, 1.0
      %v1484 = vsub.f32 %v1362, 1.0
      %v1485 = vsub.f32 %v1364, 1.0
      %v1486 = vsub.f32 %v1366, 1.0
      %v1487 = vsub.f32 %v1368, 1.0
      %v1488 = vsub.f32 %v1370, 1.0
      %v1489 = vsub.f32 %v1372, 1.0
      %v1490 = vsub.f32 %v1374, 1.0
      %v1491 = vsub.f32 %v1376, 1.0
      %v1492 = vsub.f32 %v1378, 1.0
      %v1493 = vsub.f32 %v1380, 1.0
      %v1494 = vsub.f32 %v1382, 1.0
      %v1495 = vsub.f32 %v1384, 1.0
      %v1496 = vsub.f32 %v1386, 1.0
      %v1497 = vsub.f32 %v1388, 1.0
      %v1498 = vsub.f32 %v1390, 1.0
      %v1499 = vsub.f32 %v1392, 1.0
      %v1500 = vsub.f32 %v1394, 1.0
      %v1501 = vsub.f32 %v1396, 1.0
      %v1502 = vsub.f32 %v1398, 1.0
      %v1503 = vsub.f32 %v1400, 1.0
      %v1504 = vsub.f32 %v1402, 1.0
      %v1505 = vsub.f32 %v1404, 1.0
      %v1506 = vsub.f32 %v1406, 1.0
      %v1507 = vsub.f32 %v1408, 1.0
      %v1508 = vsub.f32 %v1410, 1.0
      %v1509 = vsub.f32 %v1412, 1.0
      %v1510 = vsub.f32 %v1414, 1.0
      %v1511 = vsub.f32 %v1416, 1.0
      %v1512 = vsub.f32 %v1418, 1.0
      %v1513 = vsub.f32 %v1420, 1.0
      %v1514 = vsub.f32 %v1422, 1.0
      %v1515 = vsub.f32 %v1424, 1.0
      %v1516 = vsub.f32 %v1426, 1.0
      %v1517 = vsub.f32 %v1428, 1.0
      %v1518 = vsub.f32 %v1430, 1.0
      %v1519 = vsub.f32 %v1432, 1.0
      %v1520 = vsub.f32 %v1434, 1.0
      %v1521 = vsub.f32 %v1436, 1.0
      %v1522 = vsub.f32 %v1438, 1.0
      %v1523 = vsub.f32 %v1440, 1.0
      %v1524 = vsub.f32 %v1442, 1.0
      %v1525 = vsub.f32 %v1444, 1.0
      %v1526 = vsub.f32 %v1446, 1.0
      %v1527 = vsub.f32 %v1448, 1.0
      %v1528 = vsub.f32 %v1450, 1.0
      %v1529 = vsub.f32 %v1452, 1.0
      %v1530 = vsub.f32 %v1454, 1.0
      %v1531 = vsub.f32 %v1456, 1.0
      %v1532 = vsub.f32 %v1458, 1.0
      %v1533 = vsub.f32 %v1460, 1.0
      %v1534 = vsub.f32 %v1462, 1.0
      %v1535 = vsub.f32 %v1464, 1.0
      %v1536 = vsub.f32 %v1466, 1.0
      %v1537 = vsub.f32 %v1468, 1.0
      %v1538 = vsub.f32 %v1470, 1.0
      %v1539 = vsub.f32 %v1472, 1.0
      %v1540 = vsub.f32 %v1474, 1.0
      %v1541 = vsub.f32 %v1476, 1.0
      %v1542 = vsub.f32 %v1478, 1.0
      %v1543 = vsel %vm1287, %v673, %v1479
      %v1544 = vsel %vm1288, %v676, %v1480
      %v1545 = vsel %vm1289, %v681, %v1481
      %v1546 = vsel %vm1290, %v684, %v1482
      %v1547 = vsel %vm1291, %v689, %v1483
      %v1548 = vsel %vm1292, %v692, %v1484
      %v1549 = vsel %vm1293, %v697, %v1485
      %v1550 = vsel %vm1294, %v700, %v1486
      %v1551 = vsel %vm1295, %v705, %v1487
      %v1552 = vsel %vm1296, %v708, %v1488
      %v1553 = vsel %vm1297, %v713, %v1489
      %v1554 = vsel %vm1298, %v716, %v1490
      %v1555 = vsel %vm1299, %v721, %v1491
      %v1556 = vsel %vm1300, %v724, %v1492
      %v1557 = vsel %vm1301, %v729, %v1493
      %v1558 = vsel %vm1302, %v732, %v1494
      %v1559 = vsel %vm1303, %v737, %v1495
      %v1560 = vsel %vm1304, %v740, %v1496
      %v1561 = vsel %vm1305, %v745, %v1497
      %v1562 = vsel %vm1306, %v748, %v1498
      %v1563 = vsel %vm1307, %v753, %v1499
      %v1564 = vsel %vm1308, %v756, %v1500
      %v1565 = vsel %vm1309, %v761, %v1501
      %v1566 = vsel %vm1310, %v764, %v1502
      %v1567 = vsel %vm1311, %v769, %v1503
      %v1568 = vsel %vm1312, %v772, %v1504
      %v1569 = vsel %vm1313, %v777, %v1505
      %v1570 = vsel %vm1314, %v780, %v1506
      %v1571 = vsel %vm1315, %v785, %v1507
      %v1572 = vsel %vm1316, %v788, %v1508
      %v1573 = vsel %vm1317, %v793, %v1509
      %v1574 = vsel %vm1318, %v796, %v1510
      %v1575 = vsel %vm1319, %v801, %v1511
      %v1576 = vsel %vm1320, %v804, %v1512
      %v1577 = vsel %vm1321, %v809, %v1513
      %v1578 = vsel %vm1322, %v812, %v1514
      %v1579 = vsel %vm1323, %v817, %v1515
      %v1580 = vsel %vm1324, %v820, %v1516
      %v1581 = vsel %vm1325, %v825, %v1517
      %v1582 = vsel %vm1326, %v828, %v1518
      %v1583 = vsel %vm1327, %v833, %v1519
      %v1584 = vsel %vm1328, %v836, %v1520
      %v1585 = vsel %vm1329, %v841, %v1521
      %v1586 = vsel %vm1330, %v844, %v1522
      %v1587 = vsel %vm1331, %v849, %v1523
      %v1588 = vsel %vm1332, %v852, %v1524
      %v1589 = vsel %vm1333, %v857, %v1525
      %v1590 = vsel %vm1334, %v860, %v1526
      %v1591 = vsel %vm1335, %v865, %v1527
      %v1592 = vsel %vm1336, %v868, %v1528
      %v1593 = vsel %vm1337, %v873, %v1529
      %v1594 = vsel %vm1338, %v876, %v1530
      %v1595 = vsel %vm1339, %v881, %v1531
      %v1596 = vsel %vm1340, %v884, %v1532
      %v1597 = vsel %vm1341, %v889, %v1533
      %v1598 = vsel %vm1342, %v892, %v1534
      %v1599 = vsel %vm1343, %v897, %v1535
      %v1600 = vsel %vm1344, %v900, %v1536
      %v1601 = vsel %vm1345, %v905, %v1537
      %v1602 = vsel %vm1346, %v908, %v1538
      %v1603 = vsel %vm1347, %v913, %v1539
      %v1604 = vsel %vm1348, %v916, %v1540
      %v1605 = vsel %vm1349, %v921, %v1541
      %v1606 = vsel %vm1350, %v924, %v1542
      %v1607 = vsub.f32 0.0, %v1033
      %v1608 = vsub.f32 0.0, %v1036
      %v1609 = vsub.f32 0.0, %v1041
      %v1610 = vsub.f32 0.0, %v1044
      %v1611 = vsub.f32 0.0, %v1049
      %v1612 = vsub.f32 0.0, %v1052
      %v1613 = vsub.f32 0.0, %v1057
      %v1614 = vsub.f32 0.0, %v1060
      %v1615 = vsub.f32 0.0, %v1065
      %v1616 = vsub.f32 0.0, %v1068
      %v1617 = vsub.f32 0.0, %v1073
      %v1618 = vsub.f32 0.0, %v1076
      %v1619 = vsub.f32 0.0, %v1081
      %v1620 = vsub.f32 0.0, %v1084
      %v1621 = vsub.f32 0.0, %v1089
      %v1622 = vsub.f32 0.0, %v1092
      %v1623 = vsub.f32 0.0, %v1097
      %v1624 = vsub.f32 0.0, %v1100
      %v1625 = vsub.f32 0.0, %v1105
      %v1626 = vsub.f32 0.0, %v1108
      %v1627 = vsub.f32 0.0, %v1113
      %v1628 = vsub.f32 0.0, %v1116
      %v1629 = vsub.f32 0.0, %v1121
      %v1630 = vsub.f32 0.0, %v1124
      %v1631 = vsub.f32 0.0, %v1129
      %v1632 = vsub.f32 0.0, %v1132
      %v1633 = vsub.f32 0.0, %v1137
      %v1634 = vsub.f32 0.0, %v1140
      %v1635 = vsub.f32 0.0, %v1145
      %v1636 = vsub.f32 0.0, %v1148
      %v1637 = vsub.f32 0.0, %v1153
      %v1638 = vsub.f32 0.0, %v1156
      %v1639 = vsub.f32 0.0, %v1161
      %v1640 = vsub.f32 0.0, %v1164
      %v1641 = vsub.f32 0.0, %v1169
      %v1642 = vsub.f32 0.0, %v1172
      %v1643 = vsub.f32 0.0, %v1177
      %v1644 = vsub.f32 0.0, %v1180
      %v1645 = vsub.f32 0.0, %v1185
      %v1646 = vsub.f32 0.0, %v1188
      %v1647 = vsub.f32 0.0, %v1193
      %v1648 = vsub.f32 0.0, %v1196
      %v1649 = vsub.f32 0.0, %v1201
      %v1650 = vsub.f32 0.0, %v1204
      %v1651 = vsub.f32 0.0, %v1209
      %v1652 = vsub.f32 0.0, %v1212
      %v1653 = vsub.f32 0.0, %v1217
      %v1654 = vsub.f32 0.0, %v1220
      %v1655 = vsub.f32 0.0, %v1225
      %v1656 = vsub.f32 0.0, %v1228
      %v1657 = vsub.f32 0.0, %v1233
      %v1658 = vsub.f32 0.0, %v1236
      %v1659 = vsub.f32 0.0, %v1241
      %v1660 = vsub.f32 0.0, %v1244
      %v1661 = vsub.f32 0.0, %v1249
      %v1662 = vsub.f32 0.0, %v1252
      %v1663 = vsub.f32 0.0, %v1257
      %v1664 = vsub.f32 0.0, %v1260
      %v1665 = vsub.f32 0.0, %v1265
      %v1666 = vsub.f32 0.0, %v1268
      %v1667 = vsub.f32 0.0, %v1273
      %v1668 = vsub.f32 0.0, %v1276
      %v1669 = vsub.f32 0.0, %v1281
      %v1670 = vsub.f32 0.0, %v1284
      %v1671 = vmul.f32 %v1607, 1.442695
      %v1672 = vpow.pop %v1671
      %v1673 = vmul.f32 %v1608, 1.442695
      %v1674 = vpow.pop %v1673
      %v1675 = vmul.f32 %v1609, 1.442695
      %v1676 = vpow.pop %v1675
      %v1677 = vmul.f32 %v1610, 1.442695
      %v1678 = vpow.pop %v1677
      %v1679 = vmul.f32 %v1611, 1.442695
      %v1680 = vpow.pop %v1679
      %v1681 = vmul.f32 %v1612, 1.442695
      %v1682 = vpow.pop %v1681
      %v1683 = vmul.f32 %v1613, 1.442695
      %v1684 = vpow.pop %v1683
      %v1685 = vmul.f32 %v1614, 1.442695
      %v1686 = vpow.pop %v1685
      %v1687 = vmul.f32 %v1615, 1.442695
      %v1688 = vpow.pop %v1687
      %v1689 = vmul.f32 %v1616, 1.442695
      %v1690 = vpow.pop %v1689
      %v1691 = vmul.f32 %v1617, 1.442695
      %v1692 = vpow.pop %v1691
      %v1693 = vmul.f32 %v1618, 1.442695
      %v1694 = vpow.pop %v1693
      %v1695 = vmul.f32 %v1619, 1.442695
      %v1696 = vpow.pop %v1695
      %v1697 = vmul.f32 %v1620, 1.442695
      %v1698 = vpow.pop %v1697
      %v1699 = vmul.f32 %v1621, 1.442695
      %v1700 = vpow.pop %v1699
      %v1701 = vmul.f32 %v1622, 1.442695
      %v1702 = vpow.pop %v1701
      %v1703 = vmul.f32 %v1623, 1.442695
      %v1704 = vpow.pop %v1703
      %v1705 = vmul.f32 %v1624, 1.442695
      %v1706 = vpow.pop %v1705
      %v1707 = vmul.f32 %v1625, 1.442695
      %v1708 = vpow.pop %v1707
      %v1709 = vmul.f32 %v1626, 1.442695
      %v1710 = vpow.pop %v1709
      %v1711 = vmul.f32 %v1627, 1.442695
      %v1712 = vpow.pop %v1711
      %v1713 = vmul.f32 %v1628, 1.442695
      %v1714 = vpow.pop %v1713
      %v1715 = vmul.f32 %v1629, 1.442695
      %v1716 = vpow.pop %v1715
      %v1717 = vmul.f32 %v1630, 1.442695
      %v1718 = vpow.pop %v1717
      %v1719 = vmul.f32 %v1631, 1.442695
      %v1720 = vpow.pop %v1719
      %v1721 = vmul.f32 %v1632, 1.442695
      %v1722 = vpow.pop %v1721
      %v1723 = vmul.f32 %v1633, 1.442695
      %v1724 = vpow.pop %v1723
      %v1725 = vmul.f32 %v1634, 1.442695
      %v1726 = vpow.pop %v1725
      %v1727 = vmul.f32 %v1635, 1.442695
      %v1728 = vpow.pop %v1727
      %v1729 = vmul.f32 %v1636, 1.442695
      %v1730 = vpow.pop %v1729
      %v1731 = vmul.f32 %v1637, 1.442695
      %v1732 = vpow.pop %v1731
      %v1733 = vmul.f32 %v1638, 1.442695
      %v1734 = vpow.pop %v1733
      %v1735 = vmul.f32 %v1639, 1.442695
      %v1736 = vpow.pop %v1735
      %v1737 = vmul.f32 %v1640, 1.442695
      %v1738 = vpow.pop %v1737
      %v1739 = vmul.f32 %v1641, 1.442695
      %v1740 = vpow.pop %v1739
      %v1741 = vmul.f32 %v1642, 1.442695
      %v1742 = vpow.pop %v1741
      %v1743 = vmul.f32 %v1643, 1.442695
      %v1744 = vpow.pop %v1743
      %v1745 = vmul.f32 %v1644, 1.442695
      %v1746 = vpow.pop %v1745
      %v1747 = vmul.f32 %v1645, 1.442695
      %v1748 = vpow.pop %v1747
      %v1749 = vmul.f32 %v1646, 1.442695
      %v1750 = vpow.pop %v1749
      %v1751 = vmul.f32 %v1647, 1.442695
      %v1752 = vpow.pop %v1751
      %v1753 = vmul.f32 %v1648, 1.442695
      %v1754 = vpow.pop %v1753
      %v1755 = vmul.f32 %v1649, 1.442695
      %v1756 = vpow.pop %v1755
      %v1757 = vmul.f32 %v1650, 1.442695
      %v1758 = vpow.pop %v1757
      %v1759 = vmul.f32 %v1651, 1.442695
      %v1760 = vpow.pop %v1759
      %v1761 = vmul.f32 %v1652, 1.442695
      %v1762 = vpow.pop %v1761
      %v1763 = vmul.f32 %v1653, 1.442695
      %v1764 = vpow.pop %v1763
      %v1765 = vmul.f32 %v1654, 1.442695
      %v1766 = vpow.pop %v1765
      %v1767 = vmul.f32 %v1655, 1.442695
      %v1768 = vpow.pop %v1767
      %v1769 = vmul.f32 %v1656, 1.442695
      %v1770 = vpow.pop %v1769
      %v1771 = vmul.f32 %v1657, 1.442695
      %v1772 = vpow.pop %v1771
      %v1773 = vmul.f32 %v1658, 1.442695
      %v1774 = vpow.pop %v1773
      %v1775 = vmul.f32 %v1659, 1.442695
      %v1776 = vpow.pop %v1775
      %v1777 = vmul.f32 %v1660, 1.442695
      %v1778 = vpow.pop %v1777
      %v1779 = vmul.f32 %v1661, 1.442695
      %v1780 = vpow.pop %v1779
      %v1781 = vmul.f32 %v1662, 1.442695
      %v1782 = vpow.pop %v1781
      %v1783 = vmul.f32 %v1663, 1.442695
      %v1784 = vpow.pop %v1783
      %v1785 = vmul.f32 %v1664, 1.442695
      %v1786 = vpow.pop %v1785
      %v1787 = vmul.f32 %v1665, 1.442695
      %v1788 = vpow.pop %v1787
      %v1789 = vmul.f32 %v1666, 1.442695
      %v1790 = vpow.pop %v1789
      %v1791 = vmul.f32 %v1667, 1.442695
      %v1792 = vpow.pop %v1791
      %v1793 = vmul.f32 %v1668, 1.442695
      %v1794 = vpow.pop %v1793
      %v1795 = vmul.f32 %v1669, 1.442695
      %v1796 = vpow.pop %v1795
      %v1797 = vmul.f32 %v1670, 1.442695
      %v1798 = vpow.pop %v1797
      %v1799 = vadd.f32 %v1672, 1.0
      %v1800 = vadd.f32 %v1674, 1.0
      %v1801 = vadd.f32 %v1676, 1.0
      %v1802 = vadd.f32 %v1678, 1.0
      %v1803 = vadd.f32 %v1680, 1.0
      %v1804 = vadd.f32 %v1682, 1.0
      %v1805 = vadd.f32 %v1684, 1.0
      %v1806 = vadd.f32 %v1686, 1.0
      %v1807 = vadd.f32 %v1688, 1.0
      %v1808 = vadd.f32 %v1690, 1.0
      %v1809 = vadd.f32 %v1692, 1.0
      %v1810 = vadd.f32 %v1694, 1.0
      %v1811 = vadd.f32 %v1696, 1.0
      %v1812 = vadd.f32 %v1698, 1.0
      %v1813 = vadd.f32 %v1700, 1.0
      %v1814 = vadd.f32 %v1702, 1.0
      %v1815 = vadd.f32 %v1704, 1.0
      %v1816 = vadd.f32 %v1706, 1.0
      %v1817 = vadd.f32 %v1708, 1.0
      %v1818 = vadd.f32 %v1710, 1.0
      %v1819 = vadd.f32 %v1712, 1.0
      %v1820 = vadd.f32 %v1714, 1.0
      %v1821 = vadd.f32 %v1716, 1.0
      %v1822 = vadd.f32 %v1718, 1.0
      %v1823 = vadd.f32 %v1720, 1.0
      %v1824 = vadd.f32 %v1722, 1.0
      %v1825 = vadd.f32 %v1724, 1.0
      %v1826 = vadd.f32 %v1726, 1.0
      %v1827 = vadd.f32 %v1728, 1.0
      %v1828 = vadd.f32 %v1730, 1.0
      %v1829 = vadd.f32 %v1732, 1.0
      %v1830 = vadd.f32 %v1734, 1.0
      %v1831 = vadd.f32 %v1736, 1.0
      %v1832 = vadd.f32 %v1738, 1.0
      %v1833 = vadd.f32 %v1740, 1.0
      %v1834 = vadd.f32 %v1742, 1.0
      %v1835 = vadd.f32 %v1744, 1.0
      %v1836 = vadd.f32 %v1746, 1.0
      %v1837 = vadd.f32 %v1748, 1.0
      %v1838 = vadd.f32 %v1750, 1.0
      %v1839 = vadd.f32 %v1752, 1.0
      %v1840 = vadd.f32 %v1754, 1.0
      %v1841 = vadd.f32 %v1756, 1.0
      %v1842 = vadd.f32 %v1758, 1.0
      %v1843 = vadd.f32 %v1760, 1.0
      %v1844 = vadd.f32 %v1762, 1.0
      %v1845 = vadd.f32 %v1764, 1.0
      %v1846 = vadd.f32 %v1766, 1.0
      %v1847 = vadd.f32 %v1768, 1.0
      %v1848 = vadd.f32 %v1770, 1.0
      %v1849 = vadd.f32 %v1772, 1.0
      %v1850 = vadd.f32 %v1774, 1.0
      %v1851 = vadd.f32 %v1776, 1.0
      %v1852 = vadd.f32 %v1778, 1.0
      %v1853 = vadd.f32 %v1780, 1.0
      %v1854 = vadd.f32 %v1782, 1.0
      %v1855 = vadd.f32 %v1784, 1.0
      %v1856 = vadd.f32 %v1786, 1.0
      %v1857 = vadd.f32 %v1788, 1.0
      %v1858 = vadd.f32 %v1790, 1.0
      %v1859 = vadd.f32 %v1792, 1.0
      %v1860 = vadd.f32 %v1794, 1.0
      %v1861 = vadd.f32 %v1796, 1.0
      %v1862 = vadd.f32 %v1798, 1.0
      %v1863 = vrcp.pop %v1799
      %v1864 = vrcp.pop %v1800
      %v1865 = vrcp.pop %v1801
      %v1866 = vrcp.pop %v1802
      %v1867 = vrcp.pop %v1803
      %v1868 = vrcp.pop %v1804
      %v1869 = vrcp.pop %v1805
      %v1870 = vrcp.pop %v1806
      %v1871 = vrcp.pop %v1807
      %v1872 = vrcp.pop %v1808
      %v1873 = vrcp.pop %v1809
      %v1874 = vrcp.pop %v1810
      %v1875 = vrcp.pop %v1811
      %v1876 = vrcp.pop %v1812
      %v1877 = vrcp.pop %v1813
      %v1878 = vrcp.pop %v1814
      %v1879 = vrcp.pop %v1815
      %v1880 = vrcp.pop %v1816
      %v1881 = vrcp.pop %v1817
      %v1882 = vrcp.pop %v1818
      %v1883 = vrcp.pop %v1819
      %v1884 = vrcp.pop %v1820
      %v1885 = vrcp.pop %v1821
      %v1886 = vrcp.pop %v1822
      %v1887 = vrcp.pop %v1823
      %v1888 = vrcp.pop %v1824
      %v1889 = vrcp.pop %v1825
      %v1890 = vrcp.pop %v1826
      %v1891 = vrcp.pop %v1827
      %v1892 = vrcp.pop %v1828
      %v1893 = vrcp.pop %v1829
      %v1894 = vrcp.pop %v1830
      %v1895 = vrcp.pop %v1831
      %v1896 = vrcp.pop %v1832
      %v1897 = vrcp.pop %v1833
      %v1898 = vrcp.pop %v1834
      %v1899 = vrcp.pop %v1835
      %v1900 = vrcp.pop %v1836
      %v1901 = vrcp.pop %v1837
      %v1902 = vrcp.pop %v1838
      %v1903 = vrcp.pop %v1839
      %v1904 = vrcp.pop %v1840
      %v1905 = vrcp.pop %v1841
      %v1906 = vrcp.pop %v1842
      %v1907 = vrcp.pop %v1843
      %v1908 = vrcp.pop %v1844
      %v1909 = vrcp.pop %v1845
      %v1910 = vrcp.pop %v1846
      %v1911 = vrcp.pop %v1847
      %v1912 = vrcp.pop %v1848
      %v1913 = vrcp.pop %v1849
      %v1914 = vrcp.pop %v1850
      %v1915 = vrcp.pop %v1851
      %v1916 = vrcp.pop %v1852
      %v1917 = vrcp.pop %v1853
      %v1918 = vrcp.pop %v1854
      %v1919 = vrcp.pop %v1855
      %v1920 = vrcp.pop %v1856
      %v1921 = vrcp.pop %v1857
      %v1922 = vrcp.pop %v1858
      %v1923 = vrcp.pop %v1859
      %v1924 = vrcp.pop %v1860
      %v1925 = vrcp.pop %v1861
      %v1926 = vrcp.pop %v1862
      %v1927 = vmul.f32 %v1543, %v1863
      %v1928 = vmul.f32 %v1544, %v1864
      %v1929 = vmul.f32 %v1545, %v1865
      %v1930 = vmul.f32 %v1546, %v1866
      %v1931 = vmul.f32 %v1547, %v1867
      %v1932 = vmul.f32 %v1548, %v1868
      %v1933 = vmul.f32 %v1549, %v1869
      %v1934 = vmul.f32 %v1550, %v1870
      %v1935 = vmul.f32 %v1551, %v1871
      %v1936 = vmul.f32 %v1552, %v1872
      %v1937 = vmul.f32 %v1553, %v1873
      %v1938 = vmul.f32 %v1554, %v1874
      %v1939 = vmul.f32 %v1555, %v1875
      %v1940 = vmul.f32 %v1556, %v1876
      %v1941 = vmul.f32 %v1557, %v1877
      %v1942 = vmul.f32 %v1558, %v1878
      %v1943 = vmul.f32 %v1559, %v1879
      %v1944 = vmul.f32 %v1560, %v1880
      %v1945 = vmul.f32 %v1561, %v1881
      %v1946 = vmul.f32 %v1562, %v1882
      %v1947 = vmul.f32 %v1563, %v1883
      %v1948 = vmul.f32 %v1564, %v1884
      %v1949 = vmul.f32 %v1565, %v1885
      %v1950 = vmul.f32 %v1566, %v1886
      %v1951 = vmul.f32 %v1567, %v1887
      %v1952 = vmul.f32 %v1568, %v1888
      %v1953 = vmul.f32 %v1569, %v1889
      %v1954 = vmul.f32 %v1570, %v1890
      %v1955 = vmul.f32 %v1571, %v1891
      %v1956 = vmul.f32 %v1572, %v1892
      %v1957 = vmul.f32 %v1573, %v1893
      %v1958 = vmul.f32 %v1574, %v1894
      %v1959 = vmul.f32 %v1575, %v1895
      %v1960 = vmul.f32 %v1576, %v1896
      %v1961 = vmul.f32 %v1577, %v1897
      %v1962 = vmul.f32 %v1578, %v1898
      %v1963 = vmul.f32 %v1579, %v1899
      %v1964 = vmul.f32 %v1580, %v1900
      %v1965 = vmul.f32 %v1581, %v1901
      %v1966 = vmul.f32 %v1582, %v1902
      %v1967 = vmul.f32 %v1583, %v1903
      %v1968 = vmul.f32 %v1584, %v1904
      %v1969 = vmul.f32 %v1585, %v1905
      %v1970 = vmul.f32 %v1586, %v1906
      %v1971 = vmul.f32 %v1587, %v1907
      %v1972 = vmul.f32 %v1588, %v1908
      %v1973 = vmul.f32 %v1589, %v1909
      %v1974 = vmul.f32 %v1590, %v1910
      %v1975 = vmul.f32 %v1591, %v1911
      %v1976 = vmul.f32 %v1592, %v1912
      %v1977 = vmul.f32 %v1593, %v1913
      %v1978 = vmul.f32 %v1594, %v1914
      %v1979 = vmul.f32 %v1595, %v1915
      %v1980 = vmul.f32 %v1596, %v1916
      %v1981 = vmul.f32 %v1597, %v1917
      %v1982 = vmul.f32 %v1598, %v1918
      %v1983 = vmul.f32 %v1599, %v1919
      %v1984 = vmul.f32 %v1600, %v1920
      %v1985 = vmul.f32 %v1601, %v1921
      %v1986 = vmul.f32 %v1602, %v1922
      %v1987 = vmul.f32 %v1603, %v1923
      %v1988 = vmul.f32 %v1604, %v1924
      %v1989 = vmul.f32 %v1605, %v1925
      %v1990 = vmul.f32 %v1606, %v1926
      %vm1991 = vcmask 64512
      %1992 = vst.msk [vmem:[%s308] sm:$0xff] %vm1991, %v1927
      %1993 = vst.msk [vmem:[%s308 + $0x8] sm:$0xff] %vm1991, %v1928
      %1994 = vst.msk [vmem:[%s308 + $0x10] sm:$0xff] %vm1991, %v1929
      %1995 = vst.msk [vmem:[%s308 + $0x18] sm:$0xff] %vm1991, %v1930
      %1996 = vst.msk [vmem:[%s308 + $0x20] sm:$0xff] %vm1991, %v1931
      %1997 = vst.msk [vmem:[%s308 + $0x28] sm:$0xff] %vm1991, %v1932
      %1998 = vst.msk [vmem:[%s308 + $0x30] sm:$0xff] %vm1991, %v1933
      %1999 = vst.msk [vmem:[%s308 + $0x38] sm:$0xff] %vm1991, %v1934
      %2000 = vst.msk [vmem:[%s308 + $0x40] sm:$0xff] %vm1991, %v1935
      %2001 = vst.msk [vmem:[%s308 + $0x48] sm:$0xff] %vm1991, %v1936
      %2002 = vst.msk [vmem:[%s308 + $0x50] sm:$0xff] %vm1991, %v1937
      %2003 = vst.msk [vmem:[%s308 + $0x58] sm:$0xff] %vm1991, %v1938
      %2004 = vst.msk [vmem:[%s308 + $0x60] sm:$0xff] %vm1991, %v1939
      %2005 = vst.msk [vmem:[%s308 + $0x68] sm:$0xff] %vm1991, %v1940
      %2006 = vst.msk [vmem:[%s308 + $0x70] sm:$0xff] %vm1991, %v1941
      %2007 = vst.msk [vmem:[%s308 + $0x78] sm:$0xff] %vm1991, %v1942
      %2008 = vst.msk [vmem:[%s308 + $0x80] sm:$0xff] %vm1991, %v1943
      %2009 = vst.msk [vmem:[%s308 + $0x88] sm:$0xff] %vm1991, %v1944
      %2010 = vst.msk [vmem:[%s308 + $0x90] sm:$0xff] %vm1991, %v1945
      %2011 = vst.msk [vmem:[%s308 + $0x98] sm:$0xff] %vm1991, %v1946
      %2012 = vst.msk [vmem:[%s308 + $0xa0] sm:$0xff] %vm1991, %v1947
      %2013 = vst.msk [vmem:[%s308 + $0xa8] sm:$0xff] %vm1991, %v1948
      %2014 = vst.msk [vmem:[%s308 + $0xb0] sm:$0xff] %vm1991, %v1949
      %2015 = vst.msk [vmem:[%s308 + $0xb8] sm:$0xff] %vm1991, %v1950
      %2016 = vst.msk [vmem:[%s308 + $0xc0] sm:$0xff] %vm1991, %v1951
      %2017 = vst.msk [vmem:[%s308 + $0xc8] sm:$0xff] %vm1991, %v1952
      %2018 = vst.msk [vmem:[%s308 + $0xd0] sm:$0xff] %vm1991, %v1953
      %2019 = vst.msk [vmem:[%s308 + $0xd8] sm:$0xff] %vm1991, %v1954
      %2020 = vst.msk [vmem:[%s308 + $0xe0] sm:$0xff] %vm1991, %v1955
      %2021 = vst.msk [vmem:[%s308 + $0xe8] sm:$0xff] %vm1991, %v1956
      %2022 = vst.msk [vmem:[%s308 + $0xf0] sm:$0xff] %vm1991, %v1957
      %2023 = vst.msk [vmem:[%s308 + $0xf8] sm:$0xff] %vm1991, %v1958
      %2024 = vst.msk [vmem:[%s308 + $0x100] sm:$0xff] %vm1991, %v1959
      %2025 = vst.msk [vmem:[%s308 + $0x108] sm:$0xff] %vm1991, %v1960
      %2026 = vst.msk [vmem:[%s308 + $0x110] sm:$0xff] %vm1991, %v1961
      %2027 = vst.msk [vmem:[%s308 + $0x118] sm:$0xff] %vm1991, %v1962
      %2028 = vst.msk [vmem:[%s308 + $0x120] sm:$0xff] %vm1991, %v1963
      %2029 = vst.msk [vmem:[%s308 + $0x128] sm:$0xff] %vm1991, %v1964
      %2030 = vst.msk [vmem:[%s308 + $0x130] sm:$0xff] %vm1991, %v1965
      %2031 = vst.msk [vmem:[%s308 + $0x138] sm:$0xff] %vm1991, %v1966
      %2032 = vst.msk [vmem:[%s308 + $0x140] sm:$0xff] %vm1991, %v1967
      %2033 = vst.msk [vmem:[%s308 + $0x148] sm:$0xff] %vm1991, %v1968
      %2034 = vst.msk [vmem:[%s308 + $0x150] sm:$0xff] %vm1991, %v1969
      %2035 = vst.msk [vmem:[%s308 + $0x158] sm:$0xff] %vm1991, %v1970
      %2036 = vst.msk [vmem:[%s308 + $0x160] sm:$0xff] %vm1991, %v1971
      %2037 = vst.msk [vmem:[%s308 + $0x168] sm:$0xff] %vm1991, %v1972
      %2038 = vst.msk [vmem:[%s308 + $0x170] sm:$0xff] %vm1991, %v1973
      %2039 = vst.msk [vmem:[%s308 + $0x178] sm:$0xff] %vm1991, %v1974
      %2040 = vst.msk [vmem:[%s308 + $0x180] sm:$0xff] %vm1991, %v1975
      %2041 = vst.msk [vmem:[%s308 + $0x188] sm:$0xff] %vm1991, %v1976
      %2042 = vst.msk [vmem:[%s308 + $0x190] sm:$0xff] %vm1991, %v1977
      %2043 = vst.msk [vmem:[%s308 + $0x198] sm:$0xff] %vm1991, %v1978
      %2044 = vst.msk [vmem:[%s308 + $0x1a0] sm:$0xff] %vm1991, %v1979
      %2045 = vst.msk [vmem:[%s308 + $0x1a8] sm:$0xff] %vm1991, %v1980
      %2046 = vst.msk [vmem:[%s308 + $0x1b0] sm:$0xff] %vm1991, %v1981
      %2047 = vst.msk [vmem:[%s308 + $0x1b8] sm:$0xff] %vm1991, %v1982
      %2048 = vst.msk [vmem:[%s308 + $0x1c0] sm:$0xff] %vm1991, %v1983
      %2049 = vst.msk [vmem:[%s308 + $0x1c8] sm:$0xff] %vm1991, %v1984
      %2050 = vst.msk [vmem:[%s308 + $0x1d0] sm:$0xff] %vm1991, %v1985
      %2051 = vst.msk [vmem:[%s308 + $0x1d8] sm:$0xff] %vm1991, %v1986
      %2052 = vst.msk [vmem:[%s308 + $0x1e0] sm:$0xff] %vm1991, %v1987
      %2053 = vst.msk [vmem:[%s308 + $0x1e8] sm:$0xff] %vm1991, %v1988
      %2054 = vst.msk [vmem:[%s308 + $0x1f0] sm:$0xff] %vm1991, %v1989
      %2055 = vst.msk [vmem:[%s308 + $0x1f8] sm:$0xff] %vm1991, %v1990
      %s2056 = smul.u32 64, %s20
      %p2057 = scmp.lt.s32.totalorder %s2056, 255
      %s2058 = scalar_select %p2057, %s2056, 255
      %p2059 = scmp.lt.s32.totalorder %s21, 0
      %s2060 = scalar_select %p2059, %s21, 0
      %s2061 = sadd.s32 %s2060, %s2058
      %s2062 = smul.addr %s2061, 8
      %s2063 = scalar_lea.vmem %s5, %s2062
      // Predicated region
      $region41: #{gconv2d_pallas.1} parent=39 // pred_check
        %p2064 = pneg %p178
      $region42: #{gconv2d_pallas.1} parent=39 // pred_check_branch
        %2066 = sbr.rel (%p2064) target = $region44
      $region43: #{gconv2d_pallas.1} parent=39 // pred_region
        %s2067 = smul.u32 64, %s20
      $region44: #{gconv2d_pallas.1} parent=39 // pred_fallthru
        _
    $region40: #{gconv2d_pallas.1} parent=5 // pred_fallthru
      _
    %p2068 = scmp.le.s32.totalorder 2, %s11
    // Predicated region
    $region45: #{gconv2d_pallas.1} parent=5 // pred_check
      %p2069 = pneg %p2068
    $region46: #{gconv2d_pallas.1} parent=5 // pred_check_branch
      %2071 = sbr.rel (%p2069) target = $region48
    $region47: #{gconv2d_pallas.1} parent=5 // pred_region
      %s2072 = ssub.s32 %s11, 2
      // Predicated region
      $region49: #{gconv2d_pallas.1} parent=47 // pred_check
        %p2073 = pneg %p184
      $region50: #{gconv2d_pallas.1} parent=47 // pred_check_branch
        %2075 = sbr.rel (%p2073) target = $region52
      $region51: #{gconv2d_pallas.1} parent=47 // pred_region
        %s2076 = smul.u32 64, %s22
        %p2077 = scmp.lt.s32.totalorder %s2076, 255
        %s2078 = scalar_select %p2077, %s2076, 255
        %p2079 = scmp.lt.s32.totalorder %s23, 0
        %s2080 = scalar_select %p2079, %s23, 0
        %s2081 = sadd.s32 %s2080, %s2078
        %s2082 = smul.addr %s2081, 8
        %s2083 = scalar_lea.vmem %s5, %s2082
      $region52: #{gconv2d_pallas.1} parent=47 // pred_fallthru
        _
    $region48: #{gconv2d_pallas.1} parent=5 // pred_fallthru
      _
  $region6: #{gconv2d_pallas.1} parent=0 // loop_footer
    %s15 = sadd.s32 1, %s11
  $region7: #{gconv2d_pallas.1} parent=0 // loop_footer_branch
    %10 = sbr.rel target = $region3
  $region8: #{gconv2d_pallas.1} parent=0 // loop_exit
    _

</llo_original>
